<compile_context>
chip_gen: v6e
topology: v6e:2x2x1
jax: 0.10.0
libtpu: 0.0.40
codegen_flags: <defaults>
</compile_context>

<pallas_src>
import functools

import jax
import jax.numpy as jnp
from jax.experimental import pallas as pl
from jax.experimental.pallas import tpu as pltpu

_HEAD_PAD = 8           # sublane-padded head; true output is row 0
_LN_EPS = 1e-5          # torch.nn.LayerNorm default eps


def _mlp_kernel(*refs, num_layers, activation, compute_dtype):
    """One batch tile of the fused MLP forward.

    refs (num_layers > 1):
      x_ref  [bt, x_dim]            w0_ref [x_dim, hidden]
      wh_ref [L-1, hidden, hidden]  b_ref  [L, hidden] (LN affine pre-folded)
      wl_ref [HEAD_PAD, hidden]     bl_ref [HEAD_PAD, 1]
      o_ref  [HEAD_PAD, bt]         (transposed: batch on the lane axis)
    """
    if num_layers > 1:
        x_ref, w0_ref, wh_ref, b_ref, wl_ref, bl_ref, o_ref = refs
    else:
        x_ref, w0_ref, b_ref, wl_ref, bl_ref, o_ref = refs
        wh_ref = None
    cd = compute_dtype

    def act_norm(z, i):
        # activation + LayerNorm *without* affine (gamma/beta folded into the
        # next layer's weight/bias at wrapper time).  One-pass statistics:
        # tanh-bounded activations make mean(a^2) - mu^2 numerically safe.
        a = activation(z + b_ref[pl.ds(i, 1), :])
        mu = jnp.mean(a, axis=-1, keepdims=True)
        var = jnp.mean(a * a, axis=-1, keepdims=True) - mu * mu
        return (a - mu) * jax.lax.rsqrt(var + _LN_EPS)

    h = act_norm(jnp.dot(x_ref[...].astype(cd), w0_ref[...],
                         preferred_element_type=jnp.float32), 0)
    for i in range(1, num_layers):              # static unroll; L is small
        h = act_norm(jnp.dot(h.astype(cd), wh_ref[i - 1],
                             preferred_element_type=jnp.float32), i)

    # Transposed head: contract over hidden so the result lands as
    # [HEAD_PAD, bt] with batch on the lane axis (lane-dense, unmasked store).
    out_t = jax.lax.dot_general(
        wl_ref[...], h.astype(cd),
        dimension_numbers=(((1,), (1,)), ((), ())),
        preferred_element_type=jnp.float32)
    o_ref[...] = (out_t + bl_ref[...]).astype(o_ref.dtype)


def mlp_forward(x, w0, b0, wh, bh, gamma, beta, w_last, b_last, *,
                batch_tile=None, activation=jnp.tanh,
                compute_dtype=jnp.bfloat16):
    """x: [B, x_dim].  Torch layouts (nn.Linear weight = [out, in]):
    w0 [hidden, x_dim], b0 [hidden], wh [L-1, hidden, hidden], bh [L-1, hidden],
    gamma/beta [L, hidden], w_last [1, hidden], b_last [1]."""
    B, x_dim = x.shape
    hidden = w0.shape[0]
    num_layers = gamma.shape[0]
    cd = compute_dtype

    # ---- batch tiling: aim for an even grid of >= 4 steps (2+ per v7x TC)
    # with lane-aligned (multiple-of-128) tiles so the transposed output store
    # stays unmasked; cap tiles at 4096 rows. ----
    if batch_tile is not None:
        bt = batch_tile
    elif B >= 512:
        bt = max(128, min(4096, ((B // 4) // 128) * 128))
    elif B >= 256:
        bt = 128
    else:
        bt = B                       # tiny batch: single tile
    grid = (pl.cdiv(B, bt),)
    # NOTE: if B % bt != 0 the last tile computes on padded garbage rows; the
    # padded output columns are masked on store, so results stay correct.

    # ---- one layout per weight ([in, out]) and LayerNorm affine folding:
    #   (norm(a)*gamma_i + beta_i) @ W_{i+1} + b_{i+1}
    #     == norm(a) @ (diag(gamma_i) W_{i+1}) + (beta_i @ W_{i+1} + b_{i+1})
    # (in a real model this preprocessing would be hoisted to init). ----
    w_in = [w0.T] + [wh[i].T for i in range(num_layers - 1)]
    b_in = [b0] + [bh[i] for i in range(num_layers - 1)]
    for i in range(1, num_layers):
        b_in[i] = b_in[i] + beta[i - 1] @ w_in[i]      # uses unscaled weight
        w_in[i] = gamma[i - 1][:, None] * w_in[i]
    w_head = w_last * gamma[num_layers - 1][None, :]               # [1, hidden]
    b_head = b_last + beta[num_layers - 1] @ w_last.T              # [1]

    w0_op = w_in[0].astype(cd)                                     # [x_dim, h]
    b_op = jnp.stack(b_in).astype(jnp.float32)                     # [L, hidden]
    wl_op = jnp.pad(w_head, ((0, _HEAD_PAD - 1), (0, 0))).astype(cd)
    bl_op = jnp.pad(b_head, (0, _HEAD_PAD - 1))[:, None].astype(jnp.float32)

    # ---- operands / specs: constants single-buffered (index map never moves),
    # x / out streamed with the default double-buffering. ----
    const1 = functools.partial(pl.BlockSpec, pipeline_mode=pl.Buffered(1))
    operands = [x, w0_op]
    in_specs = [
        pl.BlockSpec((bt, x_dim), lambda i: (i, 0)),               # x (streamed)
        const1((x_dim, hidden), lambda i: (0, 0)),                 # W0
    ]
    if num_layers > 1:
        operands.append(jnp.stack(w_in[1:]).astype(cd))            # [L-1, h, h]
        in_specs.append(const1((num_layers - 1, hidden, hidden),
                               lambda i: (0, 0, 0)))
    operands += [b_op, wl_op, bl_op]
    in_specs += [
        const1((num_layers, hidden), lambda i: (0, 0)),            # fused biases
        const1((_HEAD_PAD, hidden), lambda i: (0, 0)),             # head weight
        const1((_HEAD_PAD, 1), lambda i: (0, 0)),                  # head bias
    ]

    # ---- VMEM budget: constants single-buffered, x/out double-buffered; cap
    # derived from the actual chip (v5e/v6e 128 MiB, v7x 64 MiB), 25% headroom.
    wsz = jnp.dtype(cd).itemsize
    weight_bytes = (x_dim * hidden
                    + max(num_layers - 1, 0) * hidden * hidden
                    + _HEAD_PAD * hidden) * wsz
    vec_bytes = (num_layers * hidden + _HEAD_PAD) * 4
    stream_bytes = bt * (x_dim + _HEAD_PAD) * x.dtype.itemsize
    interm_bytes = 6 * bt * hidden * 4
    vmem_needed = weight_bytes + vec_bytes + 2 * stream_bytes + interm_bytes
    try:
        vmem_cap = pltpu.get_tpu_info().vmem_capacity_bytes
    except Exception:
        vmem_cap = 64 * 1024 * 1024                    # v7x-safe fallback
    vmem_limit = int(min(max(2 * vmem_needed, 16 * 1024 * 1024),
                         (vmem_cap * 3) // 4))
    # TODO(synk): add a tiled weight pipeline (emit_pipeline over layers) once
    # (L-1)*hidden^2*itemsize approaches ~1/4 of VMEM (very large hidden).

    kernel = functools.partial(_mlp_kernel, num_layers=num_layers,
                               activation=activation, compute_dtype=cd)
    out_t = pl.pallas_call(
        kernel,
        out_shape=jax.ShapeDtypeStruct((_HEAD_PAD, B), x.dtype),
        grid_spec=pltpu.PrefetchScalarGridSpec(
            num_scalar_prefetch=0,
            grid=grid,
            in_specs=in_specs,
            out_specs=pl.BlockSpec((_HEAD_PAD, bt), lambda i: (0, i)),
        ),
        compiler_params=pltpu.CompilerParams(
            dimension_semantics=("parallel",),
            vmem_limit_bytes=vmem_limit),
    )(*operands)

    return out_t[0][:, None]          # true head is row 0 -> [B, 1]


def mlp_reference(x, w0, b0, wh, bh, gamma, beta, w_last, b_last,
                  activation=jnp.tanh):
    """Pure-JAX reference matching the PyTorch forward (activation = tanh)."""
    ws = [w0] + [wh[i] for i in range(wh.shape[0])]
    bs = [b0] + [bh[i] for i in range(wh.shape[0])]
    h = x
    for i in range(len(ws)):
        a = activation(h @ ws[i].T + bs[i])
        mu = jnp.mean(a, axis=-1, keepdims=True)
        var = jnp.mean(jnp.square(a - mu), axis=-1, keepdims=True)
        h = (a - mu) / jnp.sqrt(var + _LN_EPS) * gamma[i] + beta[i]
    return h @ w_last.T + b_last


if __name__ == "__main__":
    # Small shapes consistent with the module's __init__.
    batch, x_dim, hidden_dim, num_layers = 256, 16, 32, 3

    key = jax.random.PRNGKey(0)
    ks = jax.random.split(key, 9)

    x = jax.random.normal(ks[0], (batch, x_dim), dtype=jnp.float32)
    # nn.Linear layouts: weight [out, in], bias [out]; LN gamma/beta [hidden].
    w0 = jax.random.normal(ks[1], (hidden_dim, x_dim), dtype=jnp.float32) * 0.2
    b0 = jax.random.normal(ks[2], (hidden_dim,), dtype=jnp.float32) * 0.05
    wh = jax.random.normal(ks[3], (num_layers - 1, hidden_dim, hidden_dim),
                           dtype=jnp.float32) * 0.2
    bh = jax.random.normal(ks[4], (num_layers - 1, hidden_dim),
                           dtype=jnp.float32) * 0.05
    gamma = 1.0 + 0.1 * jax.random.normal(ks[5], (num_layers, hidden_dim),
                                          dtype=jnp.float32)
    beta = 0.1 * jax.random.normal(ks[6], (num_layers, hidden_dim),
                                   dtype=jnp.float32)
    w_last = jax.random.normal(ks[7], (1, hidden_dim), dtype=jnp.float32) * 0.2
    b_last = 0.03 * jnp.ones((1,), dtype=jnp.float32)

    ref = mlp_reference(x, w0, b0, wh, bh, gamma, beta, w_last, b_last)

    # f32 MXU path: tight-tolerance correctness check.
    out_f32 = mlp_forward(x, w0, b0, wh, bh, gamma, beta, w_last, b_last,
                          compute_dtype=jnp.float32)
    out_f32 = jax.block_until_ready(out_f32)
    assert out_f32.shape == (batch, 1)
    assert jnp.allclose(out_f32, ref, atol=1e-3, rtol=1e-3), "f32 mismatch"

    # Default bf16 MXU operands (f32 accumulation): loose-tolerance sanity run.
    out_bf16 = mlp_forward(x, w0, b0, wh, bh, gamma, beta, w_last, b_last)
    out_bf16 = jax.block_until_ready(out_bf16)
    assert out_bf16.shape == (batch, 1)
    assert jnp.allclose(out_bf16, ref, atol=2e-1, rtol=2e-1), "bf16 mismatch"

    print("KERNEL_OK")
</pallas_src>

<mosaic_0001>
module attributes {stable_mosaic.version = 11 : i64} {
  func.func @_mlp_kernel(%arg0: i32, %arg1: memref<128x16xf32, #tpu.memory_space<vmem>>, %arg2: memref<16x32xf32, #tpu.memory_space<vmem>>, %arg3: memref<2x32x32xf32, #tpu.memory_space<vmem>>, %arg4: memref<3x32xf32, #tpu.memory_space<vmem>>, %arg5: memref<8x32xf32, #tpu.memory_space<vmem>>, %arg6: memref<8x1xf32, #tpu.memory_space<vmem>>, %arg7: memref<8x128xf32, #tpu.memory_space<vmem>>) attributes {dimension_semantics = [#tpu.dimension_semantics<parallel>], iteration_bounds = array<i64: 2>, scalar_prefetch = 0 : i64, scratch_operands = 0 : i64, tpu.core_type = #tpu.core_type<tc>, window_params = [{transform_indices = @transform_0, window_bounds = array<i64: 128, 16>}, {pipeline_mode = #tpu.pipeline_mode<synchronous>, transform_indices = @transform_1, window_bounds = array<i64: 16, 32>}, {pipeline_mode = #tpu.pipeline_mode<synchronous>, transform_indices = @transform_2, window_bounds = array<i64: 2, 32, 32>}, {pipeline_mode = #tpu.pipeline_mode<synchronous>, transform_indices = @transform_3, window_bounds = array<i64: 3, 32>}, {pipeline_mode = #tpu.pipeline_mode<synchronous>, transform_indices = @transform_4, window_bounds = array<i64: 8, 32>}, {pipeline_mode = #tpu.pipeline_mode<synchronous>, transform_indices = @transform_5, window_bounds = array<i64: 8, 1>}, {transform_indices = @transform_6, window_bounds = array<i64: 8, 128>}]} {
    %c0 = arith.constant 0 : index
    %c0_0 = arith.constant 0 : index
    %0 = vector.load %arg1[%c0, %c0_0] : memref<128x16xf32, #tpu.memory_space<vmem>>, vector<128x16xf32>
    %c0_1 = arith.constant 0 : index
    %c0_2 = arith.constant 0 : index
    %1 = vector.load %arg2[%c0_1, %c0_2] : memref<16x32xf32, #tpu.memory_space<vmem>>, vector<16x32xf32>
    %cst = arith.constant dense<0.000000e+00> : vector<128x32xf32>
    %2 = tpu.matmul %0, %1, %cst {dimension_numbers = #tpu.dot_dimension_numbers<[1], [0], [0], [1], [0, 0, 1, 1], [], []>} : vector<128x16xf32>, vector<16x32xf32>, vector<128x32xf32> -> vector<128x32xf32>
    %c0_3 = arith.constant 0 : index
    %c0_4 = arith.constant 0 : index
    %3 = vector.load %arg4[%c0_3, %c0_4] : memref<3x32xf32, #tpu.memory_space<vmem>>, vector<1x32xf32>
    %4 = vector.broadcast %3 : vector<1x32xf32> to vector<128x32xf32>
    %5 = arith.addf %2, %4 : vector<128x32xf32>
    %6 = math.tanh %5 : vector<128x32xf32>
    %cst_5 = arith.constant dense<0.000000e+00> : vector<128xf32>
    %7 = vector.multi_reduction <add>, %6, %cst_5 [1] : vector<128x32xf32> to vector<128xf32>
    %8 = vector.shape_cast %7 : vector<128xf32> to vector<128x1xf32>
    %cst_6 = arith.constant 3.200000e+01 : f32
    %9 = vector.broadcast %cst_6 : f32 to vector<128x1xf32>
    %10 = arith.divf %8, %9 : vector<128x1xf32>
    %11 = arith.mulf %6, %6 : vector<128x32xf32>
    %cst_7 = arith.constant dense<0.000000e+00> : vector<128xf32>
    %12 = vector.multi_reduction <add>, %11, %cst_7 [1] : vector<128x32xf32> to vector<128xf32>
    %13 = vector.shape_cast %12 : vector<128xf32> to vector<128x1xf32>
    %cst_8 = arith.constant 3.200000e+01 : f32
    %14 = vector.broadcast %cst_8 : f32 to vector<128x1xf32>
    %15 = arith.divf %13, %14 : vector<128x1xf32>
    %16 = arith.mulf %10, %10 : vector<128x1xf32>
    %17 = arith.subf %15, %16 : vector<128x1xf32>
    %18 = vector.broadcast %10 : vector<128x1xf32> to vector<128x32xf32>
    %19 = arith.subf %6, %18 : vector<128x32xf32>
    %cst_9 = arith.constant 9.99999974E-6 : f32
    %20 = vector.broadcast %cst_9 : f32 to vector<128x1xf32>
    %21 = arith.addf %17, %20 : vector<128x1xf32>
    %22 = math.rsqrt %21 : vector<128x1xf32>
    %23 = vector.broadcast %22 : vector<128x1xf32> to vector<128x32xf32>
    %24 = arith.mulf %19, %23 : vector<128x32xf32>
    %c0_10 = arith.constant 0 : index
    %c0_11 = arith.constant 0 : index
    %c0_12 = arith.constant 0 : index
    %25 = vector.load %arg3[%c0_10, %c0_11, %c0_12] : memref<2x32x32xf32, #tpu.memory_space<vmem>>, vector<1x32x32xf32>
    %26 = vector.shape_cast %25 : vector<1x32x32xf32> to vector<32x32xf32>
    %cst_13 = arith.constant dense<0.000000e+00> : vector<128x32xf32>
    %27 = tpu.matmul %24, %26, %cst_13 {dimension_numbers = #tpu.dot_dimension_numbers<[1], [0], [0], [1], [0, 0, 1, 1], [], []>} : vector<128x32xf32>, vector<32x32xf32>, vector<128x32xf32> -> vector<128x32xf32>
    %c1 = arith.constant 1 : index
    %c0_14 = arith.constant 0 : index
    %28 = vector.load %arg4[%c1, %c0_14] : memref<3x32xf32, #tpu.memory_space<vmem>>, vector<1x32xf32>
    %29 = vector.broadcast %28 : vector<1x32xf32> to vector<128x32xf32>
    %30 = arith.addf %27, %29 : vector<128x32xf32>
    %31 = math.tanh %30 : vector<128x32xf32>
    %cst_15 = arith.constant dense<0.000000e+00> : vector<128xf32>
    %32 = vector.multi_reduction <add>, %31, %cst_15 [1] : vector<128x32xf32> to vector<128xf32>
    %33 = vector.shape_cast %32 : vector<128xf32> to vector<128x1xf32>
    %cst_16 = arith.constant 3.200000e+01 : f32
    %34 = vector.broadcast %cst_16 : f32 to vector<128x1xf32>
    %35 = arith.divf %33, %34 : vector<128x1xf32>
    %36 = arith.mulf %31, %31 : vector<128x32xf32>
    %cst_17 = arith.constant dense<0.000000e+00> : vector<128xf32>
    %37 = vector.multi_reduction <add>, %36, %cst_17 [1] : vector<128x32xf32> to vector<128xf32>
    %38 = vector.shape_cast %37 : vector<128xf32> to vector<128x1xf32>
    %cst_18 = arith.constant 3.200000e+01 : f32
    %39 = vector.broadcast %cst_18 : f32 to vector<128x1xf32>
    %40 = arith.divf %38, %39 : vector<128x1xf32>
    %41 = arith.mulf %35, %35 : vector<128x1xf32>
    %42 = arith.subf %40, %41 : vector<128x1xf32>
    %43 = vector.broadcast %35 : vector<128x1xf32> to vector<128x32xf32>
    %44 = arith.subf %31, %43 : vector<128x32xf32>
    %cst_19 = arith.constant 9.99999974E-6 : f32
    %45 = vector.broadcast %cst_19 : f32 to vector<128x1xf32>
    %46 = arith.addf %42, %45 : vector<128x1xf32>
    %47 = math.rsqrt %46 : vector<128x1xf32>
    %48 = vector.broadcast %47 : vector<128x1xf32> to vector<128x32xf32>
    %49 = arith.mulf %44, %48 : vector<128x32xf32>
    %c1_20 = arith.constant 1 : index
    %c0_21 = arith.constant 0 : index
    %c0_22 = arith.constant 0 : index
    %50 = vector.load %arg3[%c1_20, %c0_21, %c0_22] : memref<2x32x32xf32, #tpu.memory_space<vmem>>, vector<1x32x32xf32>
    %51 = vector.shape_cast %50 : vector<1x32x32xf32> to vector<32x32xf32>
    %cst_23 = arith.constant dense<0.000000e+00> : vector<128x32xf32>
    %52 = tpu.matmul %49, %51, %cst_23 {dimension_numbers = #tpu.dot_dimension_numbers<[1], [0], [0], [1], [0, 0, 1, 1], [], []>} : vector<128x32xf32>, vector<32x32xf32>, vector<128x32xf32> -> vector<128x32xf32>
    %c2 = arith.constant 2 : index
    %c0_24 = arith.constant 0 : index
    %53 = vector.load %arg4[%c2, %c0_24] : memref<3x32xf32, #tpu.memory_space<vmem>>, vector<1x32xf32>
    %54 = vector.broadcast %53 : vector<1x32xf32> to vector<128x32xf32>
    %55 = arith.addf %52, %54 : vector<128x32xf32>
    %56 = math.tanh %55 : vector<128x32xf32>
    %cst_25 = arith.constant dense<0.000000e+00> : vector<128xf32>
    %57 = vector.multi_reduction <add>, %56, %cst_25 [1] : vector<128x32xf32> to vector<128xf32>
    %58 = vector.shape_cast %57 : vector<128xf32> to vector<128x1xf32>
    %cst_26 = arith.constant 3.200000e+01 : f32
    %59 = vector.broadcast %cst_26 : f32 to vector<128x1xf32>
    %60 = arith.divf %58, %59 : vector<128x1xf32>
    %61 = arith.mulf %56, %56 : vector<128x32xf32>
    %cst_27 = arith.constant dense<0.000000e+00> : vector<128xf32>
    %62 = vector.multi_reduction <add>, %61, %cst_27 [1] : vector<128x32xf32> to vector<128xf32>
    %63 = vector.shape_cast %62 : vector<128xf32> to vector<128x1xf32>
    %cst_28 = arith.constant 3.200000e+01 : f32
    %64 = vector.broadcast %cst_28 : f32 to vector<128x1xf32>
    %65 = arith.divf %63, %64 : vector<128x1xf32>
    %66 = arith.mulf %60, %60 : vector<128x1xf32>
    %67 = arith.subf %65, %66 : vector<128x1xf32>
    %68 = vector.broadcast %60 : vector<128x1xf32> to vector<128x32xf32>
    %69 = arith.subf %56, %68 : vector<128x32xf32>
    %cst_29 = arith.constant 9.99999974E-6 : f32
    %70 = vector.broadcast %cst_29 : f32 to vector<128x1xf32>
    %71 = arith.addf %67, %70 : vector<128x1xf32>
    %72 = math.rsqrt %71 : vector<128x1xf32>
    %73 = vector.broadcast %72 : vector<128x1xf32> to vector<128x32xf32>
    %74 = arith.mulf %69, %73 : vector<128x32xf32>
    %c0_30 = arith.constant 0 : index
    %c0_31 = arith.constant 0 : index
    %75 = vector.load %arg5[%c0_30, %c0_31] : memref<8x32xf32, #tpu.memory_space<vmem>>, vector<8x32xf32>
    %cst_32 = arith.constant dense<0.000000e+00> : vector<8x128xf32>
    %76 = tpu.matmul %75, %74, %cst_32 {dimension_numbers = #tpu.dot_dimension_numbers<[1], [1], [0], [0], [0, 0, 1, 0], [], []>} : vector<8x32xf32>, vector<128x32xf32>, vector<8x128xf32> -> vector<8x128xf32>
    %c0_33 = arith.constant 0 : index
    %c0_34 = arith.constant 0 : index
    %77 = vector.load %arg6[%c0_33, %c0_34] : memref<8x1xf32, #tpu.memory_space<vmem>>, vector<8x1xf32>
    %78 = vector.broadcast %77 : vector<8x1xf32> to vector<8x128xf32>
    %79 = arith.addf %76, %78 : vector<8x128xf32>
    %c0_35 = arith.constant 0 : index
    %c0_36 = arith.constant 0 : index
    %80 = vector.load %arg7[%c0_35, %c0_36] : memref<8x128xf32, #tpu.memory_space<vmem>>, vector<8x128xf32>
    tpu.vector_store %arg7[%c0_35, %c0_36], %79 {strides = array<i32>} : memref<8x128xf32, #tpu.memory_space<vmem>>, vector<8x128xf32>,
    return
  }
  func.func @transform_0(%arg0: i32) -> (i32, i32) {
    %c0_i32 = arith.constant 0 : i32
    %c0_i32_0 = arith.constant 0 : i32
    return %arg0, %c0_i32 : i32, i32
  }
  func.func @transform_1(%arg0: i32) -> (i32, i32) {
    %c0_i32 = arith.constant 0 : i32
    %c0_i32_0 = arith.constant 0 : i32
    %c0_i32_1 = arith.constant 0 : i32
    return %c0_i32, %c0_i32_0 : i32, i32
  }
  func.func @transform_2(%arg0: i32) -> (i32, i32, i32) {
    %c0_i32 = arith.constant 0 : i32
    %c0_i32_0 = arith.constant 0 : i32
    %c0_i32_1 = arith.constant 0 : i32
    %c0_i32_2 = arith.constant 0 : i32
    return %c0_i32, %c0_i32_0, %c0_i32_1 : i32, i32, i32
  }
  func.func @transform_3(%arg0: i32) -> (i32, i32) {
    %c0_i32 = arith.constant 0 : i32
    %c0_i32_0 = arith.constant 0 : i32
    %c0_i32_1 = arith.constant 0 : i32
    return %c0_i32, %c0_i32_0 : i32, i32
  }
  func.func @transform_4(%arg0: i32) -> (i32, i32) {
    %c0_i32 = arith.constant 0 : i32
    %c0_i32_0 = arith.constant 0 : i32
    %c0_i32_1 = arith.constant 0 : i32
    return %c0_i32, %c0_i32_0 : i32, i32
  }
  func.func @transform_5(%arg0: i32) -> (i32, i32) {
    %c0_i32 = arith.constant 0 : i32
    %c0_i32_0 = arith.constant 0 : i32
    %c0_i32_1 = arith.constant 0 : i32
    return %c0_i32, %c0_i32_0 : i32, i32
  }
  func.func @transform_6(%arg0: i32) -> (i32, i32) {
    %c0_i32 = arith.constant 0 : i32
    %c0_i32_0 = arith.constant 0 : i32
    return %c0_i32, %arg0 : i32, i32
  }
}

</mosaic_0001>

<llo_original>
// kernel: tpu_custom_call.1
$region0: #{tpu_custom_call.1}
  #allocation0 [shape = 'u32[]', space=smem, size = 0x4, offset = 0x4, fixed_abs, tag = 'smem constant byte address 0x4 - core index']
  #allocation1 [shape = 'u32[144,128]{1,0:T(1,128)}', space=vmem, size = 0x12000, scoped, tag = 'internal scratch']
  %s0 = inlined_call_operand.vmem [shape: f32[256,16], index: 0, kind: input, shape index: {}]
  %s1 = inlined_call_operand.vmem [shape: f32[16,32], index: 1, kind: input, shape index: {}]
  %s2 = inlined_call_operand.vmem [shape: f32[2,32,32], index: 2, kind: input, shape index: {}]
  %s3 = inlined_call_operand.vmem [shape: f32[3,32], index: 3, kind: input, shape index: {}]
  %s4 = inlined_call_operand.vmem [shape: f32[8,32], index: 4, kind: input, shape index: {}]
  %s5 = inlined_call_operand.vmem [shape: f32[8,1], index: 5, kind: input, shape index: {}]
  %s6 = inlined_call_operand.hbm [shape: f32[8,256], index: 6, kind: output, shape index: {}]
  %s7 = sld [smem:[#allocation0]]
  $region57: #{tpu_custom_call.1} parent=0
    _
  %s9 = ssub.s32 1, %s7
  %s10 = scalar_select 0, %s9, %s7
  $region1: #{tpu_custom_call.1} parent=0
    #allocation2 [shape = 'u8[8192]{0}', space=vmem, size = 0x2000, scoped, tag = 'output window, operand 0']
    #allocation3 [shape = 's32[2]{0}', space=sflag, size = 0x8, scoped, tag = 'scoped memory for tpu_custom_call.1']
    %11 = vsyncpa [#allocation3], 0
    %s12 = scalar_lea.sflag [#allocation3], 1
    %13 = vsyncpa %s12, 0
    loop: start=0, step=1, limit=4
    $region2: #{tpu_custom_call.1} parent=1 // loop_pre_header
      _
    $region3: #{tpu_custom_call.1} parent=1 // loop_header
      %s15 = sphi 0, %s19
      %p16 = scmp.ge.s32.totalorder %s15, 4
      %s25 = sphi 0, %s27
      %s28 = sphi 0, %s25
      %s29 = sphi 0, %s28
      %s45 = sphi 0, %s29
      %s49 = sphi 0, %s49
      %s51 = sphi 0, %s49
      %s52 = sphi 0, %s51
      %s66 = sphi 0, %s52
      %s70 = sphi 0, %s70
      %s72 = sphi 0, %s70
      %s73 = sphi 0, %s72
      %s87 = sphi 0, %s73
      %s91 = sphi 0, %s91
      %s93 = sphi 0, %s91
      %s94 = sphi 0, %s93
      %s108 = sphi 0, %s94
      %s112 = sphi 0, %s112
      %s114 = sphi 0, %s112
      %s115 = sphi 0, %s114
      %s129 = sphi 0, %s115
      %s133 = sphi 0, %s133
      %s135 = sphi 0, %s133
      %s136 = sphi 0, %s135
      %s150 = sphi 0, %s136
      %s156 = sphi 0, %s158
      %s159 = sphi 0, %s156
      %s160 = sphi 0, %s159
      %s176 = sphi 0, %s160
    $region4: #{tpu_custom_call.1} parent=1 // loop_header_branch
      %18 = sbr.rel (%p16) target = $region8
    $region5: #{tpu_custom_call.1} parent=1 // loop_body
      %s20 = ssub.s32 %s15, 1
      %s21 = ssub.s32 %s15, 2
      %s22 = sadd.s32 %s15, 1
      %s23 = ssub.s32 %s15, %s22
      %p24 = scmp.eq.s32.totalorder %s23, 0
      %s26 = sadd.s32 %s25, 1
      %s27 = scalar_select %p24, %s25, %s26
      %p30 = pneg %p24
      %p31 = scmp.eq.s32.totalorder %s15, 1
      %p32 = por %p30, %p31
      %p33 = scmp.ne.s32.totalorder %s25, %s28
      %p34 = scmp.eq.s32.totalorder %s15, 0
      %p35 = por %p33, %p34
      %p36 = scmp.ne.s32.totalorder %s25, %s28
      %p37 = scmp.eq.s32.totalorder %s20, 1
      %p38 = por %p36, %p37
      %p39 = scmp.ne.s32.totalorder %s28, %s29
      %p40 = scmp.eq.s32.totalorder %s20, 0
      %p41 = por %p39, %p40
      %p42 = scmp.ne.s32.totalorder %s28, %s29
      %p43 = scmp.eq.s32.totalorder %s21, 1
      %p44 = por %p42, %p43
      %p46 = scmp.ne.s32.totalorder %s29, %s45
      %p47 = scmp.eq.s32.totalorder %s21, 0
      %p48 = por %p46, %p47
      %s50 = sadd.s32 %s49, 1
      %p53 = scmp.eq.s32.totalorder %s15, 1
      %p54 = scmp.ne.s32.totalorder %s49, %s51
      %p55 = scmp.eq.s32.totalorder %s15, 0
      %p56 = por %p54, %p55
      %p57 = scmp.ne.s32.totalorder %s49, %s51
      %p58 = scmp.eq.s32.totalorder %s20, 1
      %p59 = por %p57, %p58
      %p60 = scmp.ne.s32.totalorder %s51, %s52
      %p61 = scmp.eq.s32.totalorder %s20, 0
      %p62 = por %p60, %p61
      %p63 = scmp.ne.s32.totalorder %s51, %s52
      %p64 = scmp.eq.s32.totalorder %s21, 1
      %p65 = por %p63, %p64
      %p67 = scmp.ne.s32.totalorder %s52, %s66
      %p68 = scmp.eq.s32.totalorder %s21, 0
      %p69 = por %p67, %p68
      %s71 = sadd.s32 %s70, 1
      %p74 = scmp.eq.s32.totalorder %s15, 1
      %p75 = scmp.ne.s32.totalorder %s70, %s72
      %p76 = scmp.eq.s32.totalorder %s15, 0
      %p77 = por %p75, %p76
      %p78 = scmp.ne.s32.totalorder %s70, %s72
      %p79 = scmp.eq.s32.totalorder %s20, 1
      %p80 = por %p78, %p79
      %p81 = scmp.ne.s32.totalorder %s72, %s73
      %p82 = scmp.eq.s32.totalorder %s20, 0
      %p83 = por %p81, %p82
      %p84 = scmp.ne.s32.totalorder %s72, %s73
      %p85 = scmp.eq.s32.totalorder %s21, 1
      %p86 = por %p84, %p85
      %p88 = scmp.ne.s32.totalorder %s73, %s87
      %p89 = scmp.eq.s32.totalorder %s21, 0
      %p90 = por %p88, %p89
      %s92 = sadd.s32 %s91, 1
      %p95 = scmp.eq.s32.totalorder %s15, 1
      %p96 = scmp.ne.s32.totalorder %s91, %s93
      %p97 = scmp.eq.s32.totalorder %s15, 0
      %p98 = por %p96, %p97
      %p99 = scmp.ne.s32.totalorder %s91, %s93
      %p100 = scmp.eq.s32.totalorder %s20, 1
      %p101 = por %p99, %p100
      %p102 = scmp.ne.s32.totalorder %s93, %s94
      %p103 = scmp.eq.s32.totalorder %s20, 0
      %p104 = por %p102, %p103
      %p105 = scmp.ne.s32.totalorder %s93, %s94
      %p106 = scmp.eq.s32.totalorder %s21, 1
      %p107 = por %p105, %p106
      %p109 = scmp.ne.s32.totalorder %s94, %s108
      %p110 = scmp.eq.s32.totalorder %s21, 0
      %p111 = por %p109, %p110
      %s113 = sadd.s32 %s112, 1
      %p116 = scmp.eq.s32.totalorder %s15, 1
      %p117 = scmp.ne.s32.totalorder %s112, %s114
      %p118 = scmp.eq.s32.totalorder %s15, 0
      %p119 = por %p117, %p118
      %p120 = scmp.ne.s32.totalorder %s112, %s114
      %p121 = scmp.eq.s32.totalorder %s20, 1
      %p122 = por %p120, %p121
      %p123 = scmp.ne.s32.totalorder %s114, %s115
      %p124 = scmp.eq.s32.totalorder %s20, 0
      %p125 = por %p123, %p124
      %p126 = scmp.ne.s32.totalorder %s114, %s115
      %p127 = scmp.eq.s32.totalorder %s21, 1
      %p128 = por %p126, %p127
      %p130 = scmp.ne.s32.totalorder %s115, %s129
      %p131 = scmp.eq.s32.totalorder %s21, 0
      %p132 = por %p130, %p131
      %s134 = sadd.s32 %s133, 1
      %p137 = scmp.eq.s32.totalorder %s15, 1
      %p138 = scmp.ne.s32.totalorder %s133, %s135
      %p139 = scmp.eq.s32.totalorder %s15, 0
      %p140 = por %p138, %p139
      %p141 = scmp.ne.s32.totalorder %s133, %s135
      %p142 = scmp.eq.s32.totalorder %s20, 1
      %p143 = por %p141, %p142
      %p144 = scmp.ne.s32.totalorder %s135, %s136
      %p145 = scmp.eq.s32.totalorder %s20, 0
      %p146 = por %p144, %p145
      %p147 = scmp.ne.s32.totalorder %s135, %s136
      %p148 = scmp.eq.s32.totalorder %s21, 1
      %p149 = por %p147, %p148
      %p151 = scmp.ne.s32.totalorder %s136, %s150
      %p152 = scmp.eq.s32.totalorder %s21, 0
      %p153 = por %p151, %p152
      %s154 = ssub.s32 %s15, %s22
      %p155 = scmp.eq.s32.totalorder %s154, 0
      %s157 = sadd.s32 %s156, 1
      %s158 = scalar_select %p155, %s156, %s157
      %p161 = pneg %p155
      %p162 = scmp.eq.s32.totalorder %s15, 1
      %p163 = por %p161, %p162
      %p164 = scmp.ne.s32.totalorder %s156, %s159
      %p165 = scmp.eq.s32.totalorder %s15, 0
      %p166 = por %p164, %p165
      %p167 = scmp.ne.s32.totalorder %s156, %s159
      %p168 = scmp.eq.s32.totalorder %s20, 1
      %p169 = por %p167, %p168
      %p170 = scmp.ne.s32.totalorder %s159, %s160
      %p171 = scmp.eq.s32.totalorder %s20, 0
      %p172 = por %p170, %p171
      %p173 = scmp.ne.s32.totalorder %s159, %s160
      %p174 = scmp.eq.s32.totalorder %s21, 1
      %p175 = por %p173, %p174
      %p177 = scmp.ne.s32.totalorder %s160, %s176
      %p178 = scmp.eq.s32.totalorder %s21, 0
      %p179 = por %p177, %p178
      %p180 = scmp.le.s32.totalorder 1, %s15
      %p181 = scmp.lt.s32.totalorder %s15, 3
      %p182 = pnand %p180, %p181
      %p183 = pneg %p182
      // Predicated region
      $region9: #{tpu_custom_call.1} parent=5 // pred_check
        _
      $region10: #{tpu_custom_call.1} parent=5 // pred_check_branch
        %185 = sbr.rel (%p182) target = $region12
      $region11: #{tpu_custom_call.1} parent=5 // pred_region
        %s186 = ssub.s32 %s15, 1
        // Predicated region
        $region13: #{tpu_custom_call.1} parent=11 // pred_check
          %p187 = pneg %p62
        $region14: #{tpu_custom_call.1} parent=11 // pred_check_branch
          %189 = sbr.rel (%p187) target = $region16
        $region15: #{tpu_custom_call.1} parent=11 // pred_region
          _
        $region16: #{tpu_custom_call.1} parent=11 // pred_fallthru
          _
        // Predicated region
        $region17: #{tpu_custom_call.1} parent=11 // pred_check
          %p190 = pneg %p83
        $region18: #{tpu_custom_call.1} parent=11 // pred_check_branch
          %192 = sbr.rel (%p190) target = $region20
        $region19: #{tpu_custom_call.1} parent=11 // pred_region
          _
        $region20: #{tpu_custom_call.1} parent=11 // pred_fallthru
          _
        // Predicated region
        $region21: #{tpu_custom_call.1} parent=11 // pred_check
          %p193 = pneg %p104
        $region22: #{tpu_custom_call.1} parent=11 // pred_check_branch
          %195 = sbr.rel (%p193) target = $region24
        $region23: #{tpu_custom_call.1} parent=11 // pred_region
          _
        $region24: #{tpu_custom_call.1} parent=11 // pred_fallthru
          _
        // Predicated region
        $region25: #{tpu_custom_call.1} parent=11 // pred_check
          %p196 = pneg %p125
        $region26: #{tpu_custom_call.1} parent=11 // pred_check_branch
          %198 = sbr.rel (%p196) target = $region28
        $region27: #{tpu_custom_call.1} parent=11 // pred_region
          _
        $region28: #{tpu_custom_call.1} parent=11 // pred_fallthru
          _
        // Predicated region
        $region29: #{tpu_custom_call.1} parent=11 // pred_check
          %p199 = pneg %p146
        $region30: #{tpu_custom_call.1} parent=11 // pred_check_branch
          %201 = sbr.rel (%p199) target = $region32
        $region31: #{tpu_custom_call.1} parent=11 // pred_region
          _
        $region32: #{tpu_custom_call.1} parent=11 // pred_fallthru
          _
      $region12: #{tpu_custom_call.1} parent=5 // pred_fallthru
        _
      %p202 = scmp.lt.s32.totalorder %s15, 2
      // Predicated region
      $region33: #{tpu_custom_call.1} parent=5 // pred_check
        %p203 = pneg %p202
      $region34: #{tpu_custom_call.1} parent=5 // pred_check_branch
        %205 = sbr.rel (%p203) target = $region36
      $region35: #{tpu_custom_call.1} parent=5 // pred_region
        // Predicated region
        $region37: #{tpu_custom_call.1} parent=35 // pred_check
          %p206 = pneg %p35
        $region38: #{tpu_custom_call.1} parent=35 // pred_check_branch
          %208 = sbr.rel (%p206) target = $region40
        $region39: #{tpu_custom_call.1} parent=35 // pred_region
          %s209 = smul.u32 16, %s15
          %p210 = scmp.lt.s32.totalorder %s209, 31
          %s211 = scalar_select %p210, %s209, 31
          %s212 = smul.addr %s211, 8
          %s213 = scalar_lea.vmem %s0, %s212
          %s214 = smul.u32 16, %s15
        $region40: #{tpu_custom_call.1} parent=35 // pred_fallthru
          _
      $region36: #{tpu_custom_call.1} parent=5 // pred_fallthru
        _
      %p215 = scmp.le.s32.totalorder 1, %s15
      %p216 = scmp.lt.s32.totalorder %s15, 3
      %p217 = pnand %p215, %p216
      %p218 = pneg %p217
      // Predicated region
      $region41: #{tpu_custom_call.1} parent=5 // pred_check
        _
      $region42: #{tpu_custom_call.1} parent=5 // pred_check_branch
        %220 = sbr.rel (%p217) target = $region44
      $region43: #{tpu_custom_call.1} parent=5 // pred_region
        %s221 = ssub.s32 %s15, 1
        %s222 = smul.u32 16, %s20
        %p223 = scmp.lt.s32.totalorder %s222, 31
        %s224 = scalar_select %p223, %s222, 31
        %s225 = smul.addr %s224, 8
        %s226 = scalar_lea.vmem %s0, %s225
        %p227 = pneg %p41
        %p228 = pneg %p38
        %p229 = pneg %p62
        %p230 = pneg %p59
        %p231 = pneg %p83
        %p232 = pneg %p80
        %p233 = pneg %p104
        %p234 = pneg %p101
        %p235 = pneg %p125
        %p236 = pneg %p122
        %p237 = pneg %p146
        %p238 = pneg %p143
        %p239 = pneg %p172
        %p240 = pneg %p169
        %s241 = sand.u32 %s159, 1
        %s242 = scalar_lea.sflag [#allocation3], %s241
        %s243 = sand.u32 %s159, 1
        %s244 = smul.addr %s243, 8
        %s245 = scalar_lea.vmem [#allocation2], %s244
        %s246 = smul.u32 16, %s20
        %p247 = scmp.lt.s32.totalorder %s246, 31
        %s248 = scalar_select %p247, %s246, 31
        %s249 = smul.addr %s248, 8
        %s250 = scalar_lea.vmem %s0, %s249
        %s251 = smul.u32 16, %s20
        %v252 = vld [vmem:[%s250] sm:$0xff]
        %v253 = vld [vmem:[%s250 + $0x8] sm:$0xff]
        %v254 = vld [vmem:[%s250 + $0x10] sm:$0xff]
        %v255 = vld [vmem:[%s250 + $0x18] sm:$0xff]
        %v256 = vld [vmem:[%s250 + $0x20] sm:$0xff]
        %v257 = vld [vmem:[%s250 + $0x28] sm:$0xff]
        %v258 = vld [vmem:[%s250 + $0x30] sm:$0xff]
        %v259 = vld [vmem:[%s250 + $0x38] sm:$0xff]
        %v260 = vld [vmem:[%s250 + $0x40] sm:$0xff]
        %v261 = vld [vmem:[%s250 + $0x48] sm:$0xff]
        %v262 = vld [vmem:[%s250 + $0x50] sm:$0xff]
        %v263 = vld [vmem:[%s250 + $0x58] sm:$0xff]
        %v264 = vld [vmem:[%s250 + $0x60] sm:$0xff]
        %v265 = vld [vmem:[%s250 + $0x68] sm:$0xff]
        %v266 = vld [vmem:[%s250 + $0x70] sm:$0xff]
        %v267 = vld [vmem:[%s250 + $0x78] sm:$0xff]
        %v268 = vld [vmem:[%s1] sm:$0xff]
        %v269 = vld [vmem:[%s1 + $0x8] sm:$0xff]
        %v270 = vld [vmem:[%s3] sm:$0x1]
        %v271 = vlaneseq
        %v272 = vshrl.u32 %v271, 7
        %v273 = vsub.s32 0, %v272
        %v274 = vrot.slane %v270, %v273
        %vm275 = vcmask 130048
        %v277 = vsel %vm275, %v252, 0
        %v280 = vsel %vm275, %v253, 0
        %v283 = vsel %vm275, %v254, 0
        %v286 = vsel %vm275, %v255, 0
        %v289 = vsel %vm275, %v256, 0
        %v292 = vsel %vm275, %v257, 0
        %v295 = vsel %vm275, %v258, 0
        %v298 = vsel %vm275, %v259, 0
        %v301 = vsel %vm275, %v260, 0
        %v304 = vsel %vm275, %v261, 0
        %v307 = vsel %vm275, %v262, 0
        %v310 = vsel %vm275, %v263, 0
        %v313 = vsel %vm275, %v264, 0
        %v316 = vsel %vm275, %v265, 0
        %v319 = vsel %vm275, %v266, 0
        %v322 = vsel %vm275, %v267, 0
        %324 = vmatprep.subr.mxu0 0.0
        %325 = vmatpush1.msra.mxu0 0.0
        %326 = vmatprep.subr.mxu0 0.0
        %327 = vmatpush1.msra.mxu0 0.0
        %328 = vmatprep.subr.mxu0 0.0
        %329 = vmatpush1.msra.mxu0 0.0
        %330 = vmatprep.subr.mxu0 0.0
        %331 = vmatpush1.msra.mxu0 0.0
        %332 = vmatprep.subr.mxu0 0.0
        %333 = vmatpush1.msra.mxu0 0.0
        %334 = vmatprep.subr.mxu0 0.0
        %335 = vmatpush1.msra.mxu0 0.0
        %336 = vmatprep.subr.mxu0 0.0
        %337 = vmatpush1.msra.mxu0 0.0
        %338 = vmatprep.subr.mxu0 0.0
        %339 = vmatpush1.msra.mxu0 0.0
        %340 = vmatprep.subr.mxu0 0.0
        %341 = vmatpush1.msra.mxu0 0.0
        %342 = vmatprep.subr.mxu0 0.0
        %343 = vmatpush1.msra.mxu0 0.0
        %344 = vmatprep.subr.mxu0 0.0
        %345 = vmatpush1.msra.mxu0 0.0
        %346 = vmatprep.subr.mxu0 0.0
        %347 = vmatpush1.msra.mxu0 0.0
        %348 = vmatprep.subr.mxu0 0.0
        %349 = vmatpush1.msra.mxu0 0.0
        %350 = vmatprep.subr.mxu0 0.0
        %351 = vmatpush1.msra.mxu0 0.0
        %352 = vmatprep.subr.mxu0 0.0
        %353 = vmatpush1.msra.mxu0 %v269
        %354 = vmatprep.subr.mxu0 0.0
        %355 = vmatpush1.msra.mxu0 %v268
        %356 = vmatprep.subr.mxu0 0.0
        %357 = vmatpush2.msra.mxu0 0.0
        %358 = vmatprep.subr.mxu0 0.0
        %359 = vmatpush2.msra.mxu0 0.0
        %360 = vmatprep.subr.mxu0 0.0
        %361 = vmatpush2.msra.mxu0 0.0
        %362 = vmatprep.subr.mxu0 0.0
        %363 = vmatpush2.msra.mxu0 0.0
        %364 = vmatprep.subr.mxu0 0.0
        %365 = vmatpush2.msra.mxu0 0.0
        %366 = vmatprep.subr.mxu0 0.0
        %367 = vmatpush2.msra.mxu0 0.0
        %368 = vmatprep.subr.mxu0 0.0
        %369 = vmatpush2.msra.mxu0 0.0
        %370 = vmatprep.subr.mxu0 0.0
        %371 = vmatpush2.msra.mxu0 0.0
        %372 = vmatprep.subr.mxu0 0.0
        %373 = vmatpush2.msra.mxu0 0.0
        %374 = vmatprep.subr.mxu0 0.0
        %375 = vmatpush2.msra.mxu0 0.0
        %376 = vmatprep.subr.mxu0 0.0
        %377 = vmatpush2.msra.mxu0 0.0
        %378 = vmatprep.subr.mxu0 0.0
        %379 = vmatpush2.msra.mxu0 0.0
        %380 = vmatprep.subr.mxu0 0.0
        %381 = vmatpush2.msra.mxu0 0.0
        %382 = vmatprep.subr.mxu0 0.0
        %383 = vmatpush2.msra.mxu0 0.0
        %384 = vmatprep.subr.mxu0 0.0
        %385 = vmatpush2.msra.mxu0 0.0
        %386 = vmatprep.subr.mxu0 0.0
        %387 = vmatpush2.msra.mxu0 0.0
        %388 = vmatprep.mubr.f32.mxu0 0.0
        %389 = vmatmul.mubr.f32.gmra.mxu0 %v277
        %v390 = vpop.f32.mrf.mxu0
        %v391 = vadd.f32 %v274, %v390
        %v392 = vpop.f32.mrf.mxu0
        %393 = vmatprep.mubr.f32.mxu0 0.0
        %394 = vmatmul.mubr.f32.gmra.mxu0 %v280
        %v395 = vpop.f32.mrf.mxu0
        %v396 = vadd.f32 %v274, %v395
        %v397 = vpop.f32.mrf.mxu0
        %398 = vmatprep.mubr.f32.mxu0 0.0
        %399 = vmatmul.mubr.f32.gmra.mxu0 %v283
        %v400 = vpop.f32.mrf.mxu0
        %v401 = vadd.f32 %v274, %v400
        %v402 = vpop.f32.mrf.mxu0
        %403 = vmatprep.mubr.f32.mxu0 0.0
        %404 = vmatmul.mubr.f32.gmra.mxu0 %v286
        %v405 = vpop.f32.mrf.mxu0
        %v406 = vadd.f32 %v274, %v405
        %v407 = vpop.f32.mrf.mxu0
        %408 = vmatprep.mubr.f32.mxu0 0.0
        %409 = vmatmul.mubr.f32.gmra.mxu0 %v289
        %v410 = vpop.f32.mrf.mxu0
        %v411 = vadd.f32 %v274, %v410
        %v412 = vpop.f32.mrf.mxu0
        %413 = vmatprep.mubr.f32.mxu0 0.0
        %414 = vmatmul.mubr.f32.gmra.mxu0 %v292
        %v415 = vpop.f32.mrf.mxu0
        %v416 = vadd.f32 %v274, %v415
        %v417 = vpop.f32.mrf.mxu0
        %418 = vmatprep.mubr.f32.mxu0 0.0
        %419 = vmatmul.mubr.f32.gmra.mxu0 %v295
        %v420 = vpop.f32.mrf.mxu0
        %v421 = vadd.f32 %v274, %v420
        %v422 = vpop.f32.mrf.mxu0
        %423 = vmatprep.mubr.f32.mxu0 0.0
        %424 = vmatmul.mubr.f32.gmra.mxu0 %v298
        %v425 = vpop.f32.mrf.mxu0
        %v426 = vadd.f32 %v274, %v425
        %v427 = vpop.f32.mrf.mxu0
        %428 = vmatprep.mubr.f32.mxu0 0.0
        %429 = vmatmul.mubr.f32.gmra.mxu0 %v301
        %v430 = vpop.f32.mrf.mxu0
        %v431 = vadd.f32 %v274, %v430
        %v432 = vpop.f32.mrf.mxu0
        %433 = vmatprep.mubr.f32.mxu0 0.0
        %434 = vmatmul.mubr.f32.gmra.mxu0 %v304
        %v435 = vpop.f32.mrf.mxu0
        %v436 = vadd.f32 %v274, %v435
        %v437 = vpop.f32.mrf.mxu0
        %438 = vmatprep.mubr.f32.mxu0 0.0
        %439 = vmatmul.mubr.f32.gmra.mxu0 %v307
        %v440 = vpop.f32.mrf.mxu0
        %v441 = vadd.f32 %v274, %v440
        %v442 = vpop.f32.mrf.mxu0
        %443 = vmatprep.mubr.f32.mxu0 0.0
        %444 = vmatmul.mubr.f32.gmra.mxu0 %v310
        %v445 = vpop.f32.mrf.mxu0
        %v446 = vadd.f32 %v274, %v445
        %v447 = vpop.f32.mrf.mxu0
        %448 = vmatprep.mubr.f32.mxu0 0.0
        %449 = vmatmul.mubr.f32.gmra.mxu0 %v313
        %v450 = vpop.f32.mrf.mxu0
        %v451 = vadd.f32 %v274, %v450
        %v452 = vpop.f32.mrf.mxu0
        %453 = vmatprep.mubr.f32.mxu0 0.0
        %454 = vmatmul.mubr.f32.gmra.mxu0 %v316
        %v455 = vpop.f32.mrf.mxu0
        %v456 = vadd.f32 %v274, %v455
        %v457 = vpop.f32.mrf.mxu0
        %458 = vmatprep.mubr.f32.mxu0 0.0
        %459 = vmatmul.mubr.f32.gmra.mxu0 %v319
        %v460 = vpop.f32.mrf.mxu0
        %v461 = vadd.f32 %v274, %v460
        %v462 = vpop.f32.mrf.mxu0
        %463 = vmatprep.mubr.f32.mxu0 0.0
        %464 = vmatmul.mubr.f32.gmra.mxu0 %v322
        %v465 = vpop.f32.mrf.mxu0
        %v466 = vadd.f32 %v274, %v465
        %v467 = vpop.f32.mrf.mxu0
        %468 = vdwg.mxu0
        %v469 = vtanh.pop %v391
        %v470 = vtanh.pop %v396
        %v471 = vtanh.pop %v401
        %v472 = vtanh.pop %v406
        %v473 = vtanh.pop %v411
        %v474 = vtanh.pop %v416
        %v475 = vtanh.pop %v421
        %v476 = vtanh.pop %v426
        %v477 = vtanh.pop %v431
        %v478 = vtanh.pop %v436
        %v479 = vtanh.pop %v441
        %v480 = vtanh.pop %v446
        %v481 = vtanh.pop %v451
        %v482 = vtanh.pop %v456
        %v483 = vtanh.pop %v461
        %v484 = vtanh.pop %v466
        %vm485 = vcmask 261120
        %v486 = vsel %vm485, %v469, 0.0
        %487 = vadd.xlane.f32.xlu0 %v486
        %v488 = vpop.xlane.xlu0 %487
        %v489 = vsel %vm485, %v470, 0.0
        %490 = vadd.xlane.f32.xlu0 %v489
        %v491 = vpop.xlane.xlu0 %490
        %v492 = vsel %vm485, %v471, 0.0
        %493 = vadd.xlane.f32.xlu0 %v492
        %v494 = vpop.xlane.xlu0 %493
        %v495 = vsel %vm485, %v472, 0.0
        %496 = vadd.xlane.f32.xlu0 %v495
        %v497 = vpop.xlane.xlu0 %496
        %v498 = vsel %vm485, %v473, 0.0
        %499 = vadd.xlane.f32.xlu0 %v498
        %v500 = vpop.xlane.xlu0 %499
        %v501 = vsel %vm485, %v474, 0.0
        %502 = vadd.xlane.f32.xlu0 %v501
        %v503 = vpop.xlane.xlu0 %502
        %v504 = vsel %vm485, %v475, 0.0
        %505 = vadd.xlane.f32.xlu0 %v504
        %v506 = vpop.xlane.xlu0 %505
        %v507 = vsel %vm485, %v476, 0.0
        %508 = vadd.xlane.f32.xlu0 %v507
        %v509 = vpop.xlane.xlu0 %508
        %v510 = vsel %vm485, %v477, 0.0
        %511 = vadd.xlane.f32.xlu0 %v510
        %v512 = vpop.xlane.xlu0 %511
        %v513 = vsel %vm485, %v478, 0.0
        %514 = vadd.xlane.f32.xlu0 %v513
        %v515 = vpop.xlane.xlu0 %514
        %v516 = vsel %vm485, %v479, 0.0
        %517 = vadd.xlane.f32.xlu0 %v516
        %v518 = vpop.xlane.xlu0 %517
        %v519 = vsel %vm485, %v480, 0.0
        %520 = vadd.xlane.f32.xlu0 %v519
        %v521 = vpop.xlane.xlu0 %520
        %v522 = vsel %vm485, %v481, 0.0
        %523 = vadd.xlane.f32.xlu0 %v522
        %v524 = vpop.xlane.xlu0 %523
        %v525 = vsel %vm485, %v482, 0.0
        %526 = vadd.xlane.f32.xlu0 %v525
        %v527 = vpop.xlane.xlu0 %526
        %v528 = vsel %vm485, %v483, 0.0
        %529 = vadd.xlane.f32.xlu0 %v528
        %v530 = vpop.xlane.xlu0 %529
        %v531 = vsel %vm485, %v484, 0.0
        %532 = vadd.xlane.f32.xlu0 %v531
        %v533 = vpop.xlane.xlu0 %532
        %v534 = vrcp.pop 32.0
        %v535 = vmul.f32 %v488, %v534
        %v536 = vmul.f32 %v491, %v534
        %v537 = vmul.f32 %v494, %v534
        %v538 = vmul.f32 %v497, %v534
        %v539 = vmul.f32 %v500, %v534
        %v540 = vmul.f32 %v503, %v534
        %v541 = vmul.f32 %v506, %v534
        %v542 = vmul.f32 %v509, %v534
        %v543 = vmul.f32 %v512, %v534
        %v544 = vmul.f32 %v515, %v534
        %v545 = vmul.f32 %v518, %v534
        %v546 = vmul.f32 %v521, %v534
        %v547 = vmul.f32 %v524, %v534
        %v548 = vmul.f32 %v527, %v534
        %v549 = vmul.f32 %v530, %v534
        %v550 = vmul.f32 %v533, %v534
        %v551 = vmul.f32 %v469, %v469
        %v552 = vmul.f32 %v470, %v470
        %v553 = vmul.f32 %v471, %v471
        %v554 = vmul.f32 %v472, %v472
        %v555 = vmul.f32 %v473, %v473
        %v556 = vmul.f32 %v474, %v474
        %v557 = vmul.f32 %v475, %v475
        %v558 = vmul.f32 %v476, %v476
        %v559 = vmul.f32 %v477, %v477
        %v560 = vmul.f32 %v478, %v478
        %v561 = vmul.f32 %v479, %v479
        %v562 = vmul.f32 %v480, %v480
        %v563 = vmul.f32 %v481, %v481
        %v564 = vmul.f32 %v482, %v482
        %v565 = vmul.f32 %v483, %v483
        %v566 = vmul.f32 %v484, %v484
        %v567 = vsel %vm485, %v551, 0.0
        %568 = vadd.xlane.f32.xlu0 %v567
        %v569 = vpop.xlane.xlu0 %568
        %v570 = vsel %vm485, %v552, 0.0
        %571 = vadd.xlane.f32.xlu0 %v570
        %v572 = vpop.xlane.xlu0 %571
        %v573 = vsel %vm485, %v553, 0.0
        %574 = vadd.xlane.f32.xlu0 %v573
        %v575 = vpop.xlane.xlu0 %574
        %v576 = vsel %vm485, %v554, 0.0
        %577 = vadd.xlane.f32.xlu0 %v576
        %v578 = vpop.xlane.xlu0 %577
        %v579 = vsel %vm485, %v555, 0.0
        %580 = vadd.xlane.f32.xlu0 %v579
        %v581 = vpop.xlane.xlu0 %580
        %v582 = vsel %vm485, %v556, 0.0
        %583 = vadd.xlane.f32.xlu0 %v582
        %v584 = vpop.xlane.xlu0 %583
        %v585 = vsel %vm485, %v557, 0.0
        %586 = vadd.xlane.f32.xlu0 %v585
        %v587 = vpop.xlane.xlu0 %586
        %v588 = vsel %vm485, %v558, 0.0
        %589 = vadd.xlane.f32.xlu0 %v588
        %v590 = vpop.xlane.xlu0 %589
        %v591 = vsel %vm485, %v559, 0.0
        %592 = vadd.xlane.f32.xlu0 %v591
        %v593 = vpop.xlane.xlu0 %592
        %v594 = vsel %vm485, %v560, 0.0
        %595 = vadd.xlane.f32.xlu0 %v594
        %v596 = vpop.xlane.xlu0 %595
        %v597 = vsel %vm485, %v561, 0.0
        %598 = vadd.xlane.f32.xlu0 %v597
        %v599 = vpop.xlane.xlu0 %598
        %v600 = vsel %vm485, %v562, 0.0
        %601 = vadd.xlane.f32.xlu0 %v600
        %v602 = vpop.xlane.xlu0 %601
        %v603 = vsel %vm485, %v563, 0.0
        %604 = vadd.xlane.f32.xlu0 %v603
        %v605 = vpop.xlane.xlu0 %604
        %v606 = vsel %vm485, %v564, 0.0
        %607 = vadd.xlane.f32.xlu0 %v606
        %v608 = vpop.xlane.xlu0 %607
        %v609 = vsel %vm485, %v565, 0.0
        %610 = vadd.xlane.f32.xlu0 %v609
        %v611 = vpop.xlane.xlu0 %610
        %v612 = vsel %vm485, %v566, 0.0
        %613 = vadd.xlane.f32.xlu0 %v612
        %v614 = vpop.xlane.xlu0 %613
        %v615 = vmul.f32 %v569, %v534
        %v616 = vmul.f32 %v572, %v534
        %v617 = vmul.f32 %v575, %v534
        %v618 = vmul.f32 %v578, %v534
        %v619 = vmul.f32 %v581, %v534
        %v620 = vmul.f32 %v584, %v534
        %v621 = vmul.f32 %v587, %v534
        %v622 = vmul.f32 %v590, %v534
        %v623 = vmul.f32 %v593, %v534
        %v624 = vmul.f32 %v596, %v534
        %v625 = vmul.f32 %v599, %v534
        %v626 = vmul.f32 %v602, %v534
        %v627 = vmul.f32 %v605, %v534
        %v628 = vmul.f32 %v608, %v534
        %v629 = vmul.f32 %v611, %v534
        %v630 = vmul.f32 %v614, %v534
        %v631 = vmul.f32 %v535, %v535
        %v632 = vmul.f32 %v536, %v536
        %v633 = vmul.f32 %v537, %v537
        %v634 = vmul.f32 %v538, %v538
        %v635 = vmul.f32 %v539, %v539
        %v636 = vmul.f32 %v540, %v540
        %v637 = vmul.f32 %v541, %v541
        %v638 = vmul.f32 %v542, %v542
        %v639 = vmul.f32 %v543, %v543
        %v640 = vmul.f32 %v544, %v544
        %v641 = vmul.f32 %v545, %v545
        %v642 = vmul.f32 %v546, %v546
        %v643 = vmul.f32 %v547, %v547
        %v644 = vmul.f32 %v548, %v548
        %v645 = vmul.f32 %v549, %v549
        %v646 = vmul.f32 %v550, %v550
        %v647 = vsub.f32 %v615, %v631
        %v648 = vsub.f32 %v616, %v632
        %v649 = vsub.f32 %v617, %v633
        %v650 = vsub.f32 %v618, %v634
        %v651 = vsub.f32 %v619, %v635
        %v652 = vsub.f32 %v620, %v636
        %v653 = vsub.f32 %v621, %v637
        %v654 = vsub.f32 %v622, %v638
        %v655 = vsub.f32 %v623, %v639
        %v656 = vsub.f32 %v624, %v640
        %v657 = vsub.f32 %v625, %v641
        %v658 = vsub.f32 %v626, %v642
        %v659 = vsub.f32 %v627, %v643
        %v660 = vsub.f32 %v628, %v644
        %v661 = vsub.f32 %v629, %v645
        %v662 = vsub.f32 %v630, %v646
        %v663 = vsub.f32 %v469, %v535
        %v664 = vsub.f32 %v470, %v536
        %v665 = vsub.f32 %v471, %v537
        %v666 = vsub.f32 %v472, %v538
        %v667 = vsub.f32 %v473, %v539
        %v668 = vsub.f32 %v474, %v540
        %v669 = vsub.f32 %v475, %v541
        %v670 = vsub.f32 %v476, %v542
        %v671 = vsub.f32 %v477, %v543
        %v672 = vsub.f32 %v478, %v544
        %v673 = vsub.f32 %v479, %v545
        %v674 = vsub.f32 %v480, %v546
        %v675 = vsub.f32 %v481, %v547
        %v676 = vsub.f32 %v482, %v548
        %v677 = vsub.f32 %v483, %v549
        %v678 = vsub.f32 %v484, %v550
        %v679 = vadd.f32 %v647, 1e-05
        %v680 = vadd.f32 %v648, 1e-05
        %v681 = vadd.f32 %v649, 1e-05
        %v682 = vadd.f32 %v650, 1e-05
        %v683 = vadd.f32 %v651, 1e-05
        %v684 = vadd.f32 %v652, 1e-05
        %v685 = vadd.f32 %v653, 1e-05
        %v686 = vadd.f32 %v654, 1e-05
        %v687 = vadd.f32 %v655, 1e-05
        %v688 = vadd.f32 %v656, 1e-05
        %v689 = vadd.f32 %v657, 1e-05
        %v690 = vadd.f32 %v658, 1e-05
        %v691 = vadd.f32 %v659, 1e-05
        %v692 = vadd.f32 %v660, 1e-05
        %v693 = vadd.f32 %v661, 1e-05
        %v694 = vadd.f32 %v662, 1e-05
        %v695 = vrsqrt.pop %v679
        %v696 = vrsqrt.pop %v680
        %v697 = vrsqrt.pop %v681
        %v698 = vrsqrt.pop %v682
        %v699 = vrsqrt.pop %v683
        %v700 = vrsqrt.pop %v684
        %v701 = vrsqrt.pop %v685
        %v702 = vrsqrt.pop %v686
        %v703 = vrsqrt.pop %v687
        %v704 = vrsqrt.pop %v688
        %v705 = vrsqrt.pop %v689
        %v706 = vrsqrt.pop %v690
        %v707 = vrsqrt.pop %v691
        %v708 = vrsqrt.pop %v692
        %v709 = vrsqrt.pop %v693
        %v710 = vrsqrt.pop %v694
        %v711 = vmul.f32 %v663, %v695
        %v712 = vmul.f32 %v664, %v696
        %v713 = vmul.f32 %v665, %v697
        %v714 = vmul.f32 %v666, %v698
        %v715 = vmul.f32 %v667, %v699
        %v716 = vmul.f32 %v668, %v700
        %v717 = vmul.f32 %v669, %v701
        %v718 = vmul.f32 %v670, %v702
        %v719 = vmul.f32 %v671, %v703
        %v720 = vmul.f32 %v672, %v704
        %v721 = vmul.f32 %v673, %v705
        %v722 = vmul.f32 %v674, %v706
        %v723 = vmul.f32 %v675, %v707
        %v724 = vmul.f32 %v676, %v708
        %v725 = vmul.f32 %v677, %v709
        %v726 = vmul.f32 %v678, %v710
        %v727 = vld [vmem:[%s2] sm:$0xff]
        %v728 = vld [vmem:[%s2 + $0x8] sm:$0xff]
        %v729 = vld [vmem:[%s2 + $0x10] sm:$0xff]
        %v730 = vld [vmem:[%s2 + $0x18] sm:$0xff]
        %v731 = vld [vmem:[%s3 + $0x1] sm:$0x1]
        %v732 = vlaneseq
        %v733 = vshrl.u32 %v732, 7
        %v734 = vsub.s32 0, %v733
        %v735 = vrot.slane %v731, %v734
        %v737 = vsel %vm485, %v711, 0
        %v740 = vsel %vm485, %v712, 0
        %v743 = vsel %vm485, %v713, 0
        %v746 = vsel %vm485, %v714, 0
        %v749 = vsel %vm485, %v715, 0
        %v752 = vsel %vm485, %v716, 0
        %v755 = vsel %vm485, %v717, 0
        %v758 = vsel %vm485, %v718, 0
        %v761 = vsel %vm485, %v719, 0
        %v764 = vsel %vm485, %v720, 0
        %v767 = vsel %vm485, %v721, 0
        %v770 = vsel %vm485, %v722, 0
        %v773 = vsel %vm485, %v723, 0
        %v776 = vsel %vm485, %v724, 0
        %v779 = vsel %vm485, %v725, 0
        %v782 = vsel %vm485, %v726, 0
        %784 = vmatprep.subr.mxu0 0.0
        %785 = vmatpush1.msra.mxu0 0.0
        %786 = vmatprep.subr.mxu0 0.0
        %787 = vmatpush1.msra.mxu0 0.0
        %788 = vmatprep.subr.mxu0 0.0
        %789 = vmatpush1.msra.mxu0 0.0
        %790 = vmatprep.subr.mxu0 0.0
        %791 = vmatpush1.msra.mxu0 0.0
        %792 = vmatprep.subr.mxu0 0.0
        %793 = vmatpush1.msra.mxu0 0.0
        %794 = vmatprep.subr.mxu0 0.0
        %795 = vmatpush1.msra.mxu0 0.0
        %796 = vmatprep.subr.mxu0 0.0
        %797 = vmatpush1.msra.mxu0 0.0
        %798 = vmatprep.subr.mxu0 0.0
        %799 = vmatpush1.msra.mxu0 0.0
        %800 = vmatprep.subr.mxu0 0.0
        %801 = vmatpush1.msra.mxu0 0.0
        %802 = vmatprep.subr.mxu0 0.0
        %803 = vmatpush1.msra.mxu0 0.0
        %804 = vmatprep.subr.mxu0 0.0
        %805 = vmatpush1.msra.mxu0 0.0
        %806 = vmatprep.subr.mxu0 0.0
        %807 = vmatpush1.msra.mxu0 0.0
        %808 = vmatprep.subr.mxu0 0.0
        %809 = vmatpush1.msra.mxu0 %v730
        %810 = vmatprep.subr.mxu0 0.0
        %811 = vmatpush1.msra.mxu0 %v729
        %812 = vmatprep.subr.mxu0 0.0
        %813 = vmatpush1.msra.mxu0 %v728
        %814 = vmatprep.subr.mxu0 0.0
        %815 = vmatpush1.msra.mxu0 %v727
        %816 = vmatprep.subr.mxu0 0.0
        %817 = vmatpush2.msra.mxu0 0.0
        %818 = vmatprep.subr.mxu0 0.0
        %819 = vmatpush2.msra.mxu0 0.0
        %820 = vmatprep.subr.mxu0 0.0
        %821 = vmatpush2.msra.mxu0 0.0
        %822 = vmatprep.subr.mxu0 0.0
        %823 = vmatpush2.msra.mxu0 0.0
        %824 = vmatprep.subr.mxu0 0.0
        %825 = vmatpush2.msra.mxu0 0.0
        %826 = vmatprep.subr.mxu0 0.0
        %827 = vmatpush2.msra.mxu0 0.0
        %828 = vmatprep.subr.mxu0 0.0
        %829 = vmatpush2.msra.mxu0 0.0
        %830 = vmatprep.subr.mxu0 0.0
        %831 = vmatpush2.msra.mxu0 0.0
        %832 = vmatprep.subr.mxu0 0.0
        %833 = vmatpush2.msra.mxu0 0.0
        %834 = vmatprep.subr.mxu0 0.0
        %835 = vmatpush2.msra.mxu0 0.0
        %836 = vmatprep.subr.mxu0 0.0
        %837 = vmatpush2.msra.mxu0 0.0
        %838 = vmatprep.subr.mxu0 0.0
        %839 = vmatpush2.msra.mxu0 0.0
        %840 = vmatprep.subr.mxu0 0.0
        %841 = vmatpush2.msra.mxu0 0.0
        %842 = vmatprep.subr.mxu0 0.0
        %843 = vmatpush2.msra.mxu0 0.0
        %844 = vmatprep.subr.mxu0 0.0
        %845 = vmatpush2.msra.mxu0 0.0
        %846 = vmatprep.subr.mxu0 0.0
        %847 = vmatpush2.msra.mxu0 0.0
        %848 = vmatprep.mubr.f32.mxu0 0.0
        %849 = vmatmul.mubr.f32.gmra.mxu0 %v737
        %v850 = vpop.f32.mrf.mxu0
        %v851 = vadd.f32 %v735, %v850
        %v852 = vpop.f32.mrf.mxu0
        %853 = vmatprep.mubr.f32.mxu0 0.0
        %854 = vmatmul.mubr.f32.gmra.mxu0 %v740
        %v855 = vpop.f32.mrf.mxu0
        %v856 = vadd.f32 %v735, %v855
        %v857 = vpop.f32.mrf.mxu0
        %858 = vmatprep.mubr.f32.mxu0 0.0
        %859 = vmatmul.mubr.f32.gmra.mxu0 %v743
        %v860 = vpop.f32.mrf.mxu0
        %v861 = vadd.f32 %v735, %v860
        %v862 = vpop.f32.mrf.mxu0
        %863 = vmatprep.mubr.f32.mxu0 0.0
        %864 = vmatmul.mubr.f32.gmra.mxu0 %v746
        %v865 = vpop.f32.mrf.mxu0
        %v866 = vadd.f32 %v735, %v865
        %v867 = vpop.f32.mrf.mxu0
        %868 = vmatprep.mubr.f32.mxu0 0.0
        %869 = vmatmul.mubr.f32.gmra.mxu0 %v749
        %v870 = vpop.f32.mrf.mxu0
        %v871 = vadd.f32 %v735, %v870
        %v872 = vpop.f32.mrf.mxu0
        %873 = vmatprep.mubr.f32.mxu0 0.0
        %874 = vmatmul.mubr.f32.gmra.mxu0 %v752
        %v875 = vpop.f32.mrf.mxu0
        %v876 = vadd.f32 %v735, %v875
        %v877 = vpop.f32.mrf.mxu0
        %878 = vmatprep.mubr.f32.mxu0 0.0
        %879 = vmatmul.mubr.f32.gmra.mxu0 %v755
        %v880 = vpop.f32.mrf.mxu0
        %v881 = vadd.f32 %v735, %v880
        %v882 = vpop.f32.mrf.mxu0
        %883 = vmatprep.mubr.f32.mxu0 0.0
        %884 = vmatmul.mubr.f32.gmra.mxu0 %v758
        %v885 = vpop.f32.mrf.mxu0
        %v886 = vadd.f32 %v735, %v885
        %v887 = vpop.f32.mrf.mxu0
        %888 = vmatprep.mubr.f32.mxu0 0.0
        %889 = vmatmul.mubr.f32.gmra.mxu0 %v761
        %v890 = vpop.f32.mrf.mxu0
        %v891 = vadd.f32 %v735, %v890
        %v892 = vpop.f32.mrf.mxu0
        %893 = vmatprep.mubr.f32.mxu0 0.0
        %894 = vmatmul.mubr.f32.gmra.mxu0 %v764
        %v895 = vpop.f32.mrf.mxu0
        %v896 = vadd.f32 %v735, %v895
        %v897 = vpop.f32.mrf.mxu0
        %898 = vmatprep.mubr.f32.mxu0 0.0
        %899 = vmatmul.mubr.f32.gmra.mxu0 %v767
        %v900 = vpop.f32.mrf.mxu0
        %v901 = vadd.f32 %v735, %v900
        %v902 = vpop.f32.mrf.mxu0
        %903 = vmatprep.mubr.f32.mxu0 0.0
        %904 = vmatmul.mubr.f32.gmra.mxu0 %v770
        %v905 = vpop.f32.mrf.mxu0
        %v906 = vadd.f32 %v735, %v905
        %v907 = vpop.f32.mrf.mxu0
        %908 = vmatprep.mubr.f32.mxu0 0.0
        %909 = vmatmul.mubr.f32.gmra.mxu0 %v773
        %v910 = vpop.f32.mrf.mxu0
        %v911 = vadd.f32 %v735, %v910
        %v912 = vpop.f32.mrf.mxu0
        %913 = vmatprep.mubr.f32.mxu0 0.0
        %914 = vmatmul.mubr.f32.gmra.mxu0 %v776
        %v915 = vpop.f32.mrf.mxu0
        %v916 = vadd.f32 %v735, %v915
        %v917 = vpop.f32.mrf.mxu0
        %918 = vmatprep.mubr.f32.mxu0 0.0
        %919 = vmatmul.mubr.f32.gmra.mxu0 %v779
        %v920 = vpop.f32.mrf.mxu0
        %v921 = vadd.f32 %v735, %v920
        %v922 = vpop.f32.mrf.mxu0
        %923 = vmatprep.mubr.f32.mxu0 0.0
        %924 = vmatmul.mubr.f32.gmra.mxu0 %v782
        %v925 = vpop.f32.mrf.mxu0
        %v926 = vadd.f32 %v735, %v925
        %v927 = vpop.f32.mrf.mxu0
        %928 = vdwg.mxu0
        %v929 = vtanh.pop %v851
        %v930 = vtanh.pop %v856
        %v931 = vtanh.pop %v861
        %v932 = vtanh.pop %v866
        %v933 = vtanh.pop %v871
        %v934 = vtanh.pop %v876
        %v935 = vtanh.pop %v881
        %v936 = vtanh.pop %v886
        %v937 = vtanh.pop %v891
        %v938 = vtanh.pop %v896
        %v939 = vtanh.pop %v901
        %v940 = vtanh.pop %v906
        %v941 = vtanh.pop %v911
        %v942 = vtanh.pop %v916
        %v943 = vtanh.pop %v921
        %v944 = vtanh.pop %v926
        %v945 = vsel %vm485, %v929, 0.0
        %946 = vadd.xlane.f32.xlu0 %v945
        %v947 = vpop.xlane.xlu0 %946
        %v948 = vsel %vm485, %v930, 0.0
        %949 = vadd.xlane.f32.xlu0 %v948
        %v950 = vpop.xlane.xlu0 %949
        %v951 = vsel %vm485, %v931, 0.0
        %952 = vadd.xlane.f32.xlu0 %v951
        %v953 = vpop.xlane.xlu0 %952
        %v954 = vsel %vm485, %v932, 0.0
        %955 = vadd.xlane.f32.xlu0 %v954
        %v956 = vpop.xlane.xlu0 %955
        %v957 = vsel %vm485, %v933, 0.0
        %958 = vadd.xlane.f32.xlu0 %v957
        %v959 = vpop.xlane.xlu0 %958
        %v960 = vsel %vm485, %v934, 0.0
        %961 = vadd.xlane.f32.xlu0 %v960
        %v962 = vpop.xlane.xlu0 %961
        %v963 = vsel %vm485, %v935, 0.0
        %964 = vadd.xlane.f32.xlu0 %v963
        %v965 = vpop.xlane.xlu0 %964
        %v966 = vsel %vm485, %v936, 0.0
        %967 = vadd.xlane.f32.xlu0 %v966
        %v968 = vpop.xlane.xlu0 %967
        %v969 = vsel %vm485, %v937, 0.0
        %970 = vadd.xlane.f32.xlu0 %v969
        %v971 = vpop.xlane.xlu0 %970
        %v972 = vsel %vm485, %v938, 0.0
        %973 = vadd.xlane.f32.xlu0 %v972
        %v974 = vpop.xlane.xlu0 %973
        %v975 = vsel %vm485, %v939, 0.0
        %976 = vadd.xlane.f32.xlu0 %v975
        %v977 = vpop.xlane.xlu0 %976
        %v978 = vsel %vm485, %v940, 0.0
        %979 = vadd.xlane.f32.xlu0 %v978
        %v980 = vpop.xlane.xlu0 %979
        %v981 = vsel %vm485, %v941, 0.0
        %982 = vadd.xlane.f32.xlu0 %v981
        %v983 = vpop.xlane.xlu0 %982
        %v984 = vsel %vm485, %v942, 0.0
        %985 = vadd.xlane.f32.xlu0 %v984
        %v986 = vpop.xlane.xlu0 %985
        %v987 = vsel %vm485, %v943, 0.0
        %988 = vadd.xlane.f32.xlu0 %v987
        %v989 = vpop.xlane.xlu0 %988
        %v990 = vsel %vm485, %v944, 0.0
        %991 = vadd.xlane.f32.xlu0 %v990
        %v992 = vpop.xlane.xlu0 %991
        %v993 = vmul.f32 %v947, %v534
        %v994 = vmul.f32 %v950, %v534
        %v995 = vmul.f32 %v953, %v534
        %v996 = vmul.f32 %v956, %v534
        %v997 = vmul.f32 %v959, %v534
        %v998 = vmul.f32 %v962, %v534
        %v999 = vmul.f32 %v965, %v534
        %v1000 = vmul.f32 %v968, %v534
        %v1001 = vmul.f32 %v971, %v534
        %v1002 = vmul.f32 %v974, %v534
        %v1003 = vmul.f32 %v977, %v534
        %v1004 = vmul.f32 %v980, %v534
        %v1005 = vmul.f32 %v983, %v534
        %v1006 = vmul.f32 %v986, %v534
        %v1007 = vmul.f32 %v989, %v534
        %v1008 = vmul.f32 %v992, %v534
        %v1009 = vmul.f32 %v929, %v929
        %v1010 = vmul.f32 %v930, %v930
        %v1011 = vmul.f32 %v931, %v931
        %v1012 = vmul.f32 %v932, %v932
        %v1013 = vmul.f32 %v933, %v933
        %v1014 = vmul.f32 %v934, %v934
        %v1015 = vmul.f32 %v935, %v935
        %v1016 = vmul.f32 %v936, %v936
        %v1017 = vmul.f32 %v937, %v937
        %v1018 = vmul.f32 %v938, %v938
        %v1019 = vmul.f32 %v939, %v939
        %v1020 = vmul.f32 %v940, %v940
        %v1021 = vmul.f32 %v941, %v941
        %v1022 = vmul.f32 %v942, %v942
        %v1023 = vmul.f32 %v943, %v943
        %v1024 = vmul.f32 %v944, %v944
        %v1025 = vsel %vm485, %v1009, 0.0
        %1026 = vadd.xlane.f32.xlu0 %v1025
        %v1027 = vpop.xlane.xlu0 %1026
        %v1028 = vsel %vm485, %v1010, 0.0
        %1029 = vadd.xlane.f32.xlu0 %v1028
        %v1030 = vpop.xlane.xlu0 %1029
        %v1031 = vsel %vm485, %v1011, 0.0
        %1032 = vadd.xlane.f32.xlu0 %v1031
        %v1033 = vpop.xlane.xlu0 %1032
        %v1034 = vsel %vm485, %v1012, 0.0
        %1035 = vadd.xlane.f32.xlu0 %v1034
        %v1036 = vpop.xlane.xlu0 %1035
        %v1037 = vsel %vm485, %v1013, 0.0
        %1038 = vadd.xlane.f32.xlu0 %v1037
        %v1039 = vpop.xlane.xlu0 %1038
        %v1040 = vsel %vm485, %v1014, 0.0
        %1041 = vadd.xlane.f32.xlu0 %v1040
        %v1042 = vpop.xlane.xlu0 %1041
        %v1043 = vsel %vm485, %v1015, 0.0
        %1044 = vadd.xlane.f32.xlu0 %v1043
        %v1045 = vpop.xlane.xlu0 %1044
        %v1046 = vsel %vm485, %v1016, 0.0
        %1047 = vadd.xlane.f32.xlu0 %v1046
        %v1048 = vpop.xlane.xlu0 %1047
        %v1049 = vsel %vm485, %v1017, 0.0
        %1050 = vadd.xlane.f32.xlu0 %v1049
        %v1051 = vpop.xlane.xlu0 %1050
        %v1052 = vsel %vm485, %v1018, 0.0
        %1053 = vadd.xlane.f32.xlu0 %v1052
        %v1054 = vpop.xlane.xlu0 %1053
        %v1055 = vsel %vm485, %v1019, 0.0
        %1056 = vadd.xlane.f32.xlu0 %v1055
        %v1057 = vpop.xlane.xlu0 %1056
        %v1058 = vsel %vm485, %v1020, 0.0
        %1059 = vadd.xlane.f32.xlu0 %v1058
        %v1060 = vpop.xlane.xlu0 %1059
        %v1061 = vsel %vm485, %v1021, 0.0
        %1062 = vadd.xlane.f32.xlu0 %v1061
        %v1063 = vpop.xlane.xlu0 %1062
        %v1064 = vsel %vm485, %v1022, 0.0
        %1065 = vadd.xlane.f32.xlu0 %v1064
        %v1066 = vpop.xlane.xlu0 %1065
        %v1067 = vsel %vm485, %v1023, 0.0
        %1068 = vadd.xlane.f32.xlu0 %v1067
        %v1069 = vpop.xlane.xlu0 %1068
        %v1070 = vsel %vm485, %v1024, 0.0
        %1071 = vadd.xlane.f32.xlu0 %v1070
        %v1072 = vpop.xlane.xlu0 %1071
        %v1073 = vmul.f32 %v1027, %v534
        %v1074 = vmul.f32 %v1030, %v534
        %v1075 = vmul.f32 %v1033, %v534
        %v1076 = vmul.f32 %v1036, %v534
        %v1077 = vmul.f32 %v1039, %v534
        %v1078 = vmul.f32 %v1042, %v534
        %v1079 = vmul.f32 %v1045, %v534
        %v1080 = vmul.f32 %v1048, %v534
        %v1081 = vmul.f32 %v1051, %v534
        %v1082 = vmul.f32 %v1054, %v534
        %v1083 = vmul.f32 %v1057, %v534
        %v1084 = vmul.f32 %v1060, %v534
        %v1085 = vmul.f32 %v1063, %v534
        %v1086 = vmul.f32 %v1066, %v534
        %v1087 = vmul.f32 %v1069, %v534
        %v1088 = vmul.f32 %v1072, %v534
        %v1089 = vmul.f32 %v993, %v993
        %v1090 = vmul.f32 %v994, %v994
        %v1091 = vmul.f32 %v995, %v995
        %v1092 = vmul.f32 %v996, %v996
        %v1093 = vmul.f32 %v997, %v997
        %v1094 = vmul.f32 %v998, %v998
        %v1095 = vmul.f32 %v999, %v999
        %v1096 = vmul.f32 %v1000, %v1000
        %v1097 = vmul.f32 %v1001, %v1001
        %v1098 = vmul.f32 %v1002, %v1002
        %v1099 = vmul.f32 %v1003, %v1003
        %v1100 = vmul.f32 %v1004, %v1004
        %v1101 = vmul.f32 %v1005, %v1005
        %v1102 = vmul.f32 %v1006, %v1006
        %v1103 = vmul.f32 %v1007, %v1007
        %v1104 = vmul.f32 %v1008, %v1008
        %v1105 = vsub.f32 %v1073, %v1089
        %v1106 = vsub.f32 %v1074, %v1090
        %v1107 = vsub.f32 %v1075, %v1091
        %v1108 = vsub.f32 %v1076, %v1092
        %v1109 = vsub.f32 %v1077, %v1093
        %v1110 = vsub.f32 %v1078, %v1094
        %v1111 = vsub.f32 %v1079, %v1095
        %v1112 = vsub.f32 %v1080, %v1096
        %v1113 = vsub.f32 %v1081, %v1097
        %v1114 = vsub.f32 %v1082, %v1098
        %v1115 = vsub.f32 %v1083, %v1099
        %v1116 = vsub.f32 %v1084, %v1100
        %v1117 = vsub.f32 %v1085, %v1101
        %v1118 = vsub.f32 %v1086, %v1102
        %v1119 = vsub.f32 %v1087, %v1103
        %v1120 = vsub.f32 %v1088, %v1104
        %v1121 = vsub.f32 %v929, %v993
        %v1122 = vsub.f32 %v930, %v994
        %v1123 = vsub.f32 %v931, %v995
        %v1124 = vsub.f32 %v932, %v996
        %v1125 = vsub.f32 %v933, %v997
        %v1126 = vsub.f32 %v934, %v998
        %v1127 = vsub.f32 %v935, %v999
        %v1128 = vsub.f32 %v936, %v1000
        %v1129 = vsub.f32 %v937, %v1001
        %v1130 = vsub.f32 %v938, %v1002
        %v1131 = vsub.f32 %v939, %v1003
        %v1132 = vsub.f32 %v940, %v1004
        %v1133 = vsub.f32 %v941, %v1005
        %v1134 = vsub.f32 %v942, %v1006
        %v1135 = vsub.f32 %v943, %v1007
        %v1136 = vsub.f32 %v944, %v1008
        %v1137 = vadd.f32 %v1105, 1e-05
        %v1138 = vadd.f32 %v1106, 1e-05
        %v1139 = vadd.f32 %v1107, 1e-05
        %v1140 = vadd.f32 %v1108, 1e-05
        %v1141 = vadd.f32 %v1109, 1e-05
        %v1142 = vadd.f32 %v1110, 1e-05
        %v1143 = vadd.f32 %v1111, 1e-05
        %v1144 = vadd.f32 %v1112, 1e-05
        %v1145 = vadd.f32 %v1113, 1e-05
        %v1146 = vadd.f32 %v1114, 1e-05
        %v1147 = vadd.f32 %v1115, 1e-05
        %v1148 = vadd.f32 %v1116, 1e-05
        %v1149 = vadd.f32 %v1117, 1e-05
        %v1150 = vadd.f32 %v1118, 1e-05
        %v1151 = vadd.f32 %v1119, 1e-05
        %v1152 = vadd.f32 %v1120, 1e-05
        %v1153 = vrsqrt.pop %v1137
        %v1154 = vrsqrt.pop %v1138
        %v1155 = vrsqrt.pop %v1139
        %v1156 = vrsqrt.pop %v1140
        %v1157 = vrsqrt.pop %v1141
        %v1158 = vrsqrt.pop %v1142
        %v1159 = vrsqrt.pop %v1143
        %v1160 = vrsqrt.pop %v1144
        %v1161 = vrsqrt.pop %v1145
        %v1162 = vrsqrt.pop %v1146
        %v1163 = vrsqrt.pop %v1147
        %v1164 = vrsqrt.pop %v1148
        %v1165 = vrsqrt.pop %v1149
        %v1166 = vrsqrt.pop %v1150
        %v1167 = vrsqrt.pop %v1151
        %v1168 = vrsqrt.pop %v1152
        %v1169 = vmul.f32 %v1121, %v1153
        %v1170 = vmul.f32 %v1122, %v1154
        %v1171 = vmul.f32 %v1123, %v1155
        %v1172 = vmul.f32 %v1124, %v1156
        %v1173 = vmul.f32 %v1125, %v1157
        %v1174 = vmul.f32 %v1126, %v1158
        %v1175 = vmul.f32 %v1127, %v1159
        %v1176 = vmul.f32 %v1128, %v1160
        %v1177 = vmul.f32 %v1129, %v1161
        %v1178 = vmul.f32 %v1130, %v1162
        %v1179 = vmul.f32 %v1131, %v1163
        %v1180 = vmul.f32 %v1132, %v1164
        %v1181 = vmul.f32 %v1133, %v1165
        %v1182 = vmul.f32 %v1134, %v1166
        %v1183 = vmul.f32 %v1135, %v1167
        %v1184 = vmul.f32 %v1136, %v1168
        %s1185 = scalar_lea.vmem %s2, 32
        %v1186 = vld [vmem:[%s1185] sm:$0xff]
        %v1187 = vld [vmem:[%s1185 + $0x8] sm:$0xff]
        %v1188 = vld [vmem:[%s1185 + $0x10] sm:$0xff]
        %v1189 = vld [vmem:[%s1185 + $0x18] sm:$0xff]
        %v1190 = vld [vmem:[%s3 + $0x2] sm:$0x1]
        %v1191 = vlaneseq
        %v1192 = vshrl.u32 %v1191, 7
        %v1193 = vsub.s32 0, %v1192
        %v1194 = vrot.slane %v1190, %v1193
        %v1196 = vsel %vm485, %v1169, 0
        %v1199 = vsel %vm485, %v1170, 0
        %v1202 = vsel %vm485, %v1171, 0
        %v1205 = vsel %vm485, %v1172, 0
        %v1208 = vsel %vm485, %v1173, 0
        %v1211 = vsel %vm485, %v1174, 0
        %v1214 = vsel %vm485, %v1175, 0
        %v1217 = vsel %vm485, %v1176, 0
        %v1220 = vsel %vm485, %v1177, 0
        %v1223 = vsel %vm485, %v1178, 0
        %v1226 = vsel %vm485, %v1179, 0
        %v1229 = vsel %vm485, %v1180, 0
        %v1232 = vsel %vm485, %v1181, 0
        %v1235 = vsel %vm485, %v1182, 0
        %v1238 = vsel %vm485, %v1183, 0
        %v1241 = vsel %vm485, %v1184, 0
        %1243 = vmatprep.subr.mxu0 0.0
        %1244 = vmatpush1.msra.mxu0 0.0
        %1245 = vmatprep.subr.mxu0 0.0
        %1246 = vmatpush1.msra.mxu0 0.0
        %1247 = vmatprep.subr.mxu0 0.0
        %1248 = vmatpush1.msra.mxu0 0.0
        %1249 = vmatprep.subr.mxu0 0.0
        %1250 = vmatpush1.msra.mxu0 0.0
        %1251 = vmatprep.subr.mxu0 0.0
        %1252 = vmatpush1.msra.mxu0 0.0
        %1253 = vmatprep.subr.mxu0 0.0
        %1254 = vmatpush1.msra.mxu0 0.0
        %1255 = vmatprep.subr.mxu0 0.0
        %1256 = vmatpush1.msra.mxu0 0.0
        %1257 = vmatprep.subr.mxu0 0.0
        %1258 = vmatpush1.msra.mxu0 0.0
        %1259 = vmatprep.subr.mxu0 0.0
        %1260 = vmatpush1.msra.mxu0 0.0
        %1261 = vmatprep.subr.mxu0 0.0
        %1262 = vmatpush1.msra.mxu0 0.0
        %1263 = vmatprep.subr.mxu0 0.0
        %1264 = vmatpush1.msra.mxu0 0.0
        %1265 = vmatprep.subr.mxu0 0.0
        %1266 = vmatpush1.msra.mxu0 0.0
        %1267 = vmatprep.subr.mxu0 0.0
        %1268 = vmatpush1.msra.mxu0 %v1189
        %1269 = vmatprep.subr.mxu0 0.0
        %1270 = vmatpush1.msra.mxu0 %v1188
        %1271 = vmatprep.subr.mxu0 0.0
        %1272 = vmatpush1.msra.mxu0 %v1187
        %1273 = vmatprep.subr.mxu0 0.0
        %1274 = vmatpush1.msra.mxu0 %v1186
        %1275 = vmatprep.subr.mxu0 0.0
        %1276 = vmatpush2.msra.mxu0 0.0
        %1277 = vmatprep.subr.mxu0 0.0
        %1278 = vmatpush2.msra.mxu0 0.0
        %1279 = vmatprep.subr.mxu0 0.0
        %1280 = vmatpush2.msra.mxu0 0.0
        %1281 = vmatprep.subr.mxu0 0.0
        %1282 = vmatpush2.msra.mxu0 0.0
        %1283 = vmatprep.subr.mxu0 0.0
        %1284 = vmatpush2.msra.mxu0 0.0
        %1285 = vmatprep.subr.mxu0 0.0
        %1286 = vmatpush2.msra.mxu0 0.0
        %1287 = vmatprep.subr.mxu0 0.0
        %1288 = vmatpush2.msra.mxu0 0.0
        %1289 = vmatprep.subr.mxu0 0.0
        %1290 = vmatpush2.msra.mxu0 0.0
        %1291 = vmatprep.subr.mxu0 0.0
        %1292 = vmatpush2.msra.mxu0 0.0
        %1293 = vmatprep.subr.mxu0 0.0
        %1294 = vmatpush2.msra.mxu0 0.0
        %1295 = vmatprep.subr.mxu0 0.0
        %1296 = vmatpush2.msra.mxu0 0.0
        %1297 = vmatprep.subr.mxu0 0.0
        %1298 = vmatpush2.msra.mxu0 0.0
        %1299 = vmatprep.subr.mxu0 0.0
        %1300 = vmatpush2.msra.mxu0 0.0
        %1301 = vmatprep.subr.mxu0 0.0
        %1302 = vmatpush2.msra.mxu0 0.0
        %1303 = vmatprep.subr.mxu0 0.0
        %1304 = vmatpush2.msra.mxu0 0.0
        %1305 = vmatprep.subr.mxu0 0.0
        %1306 = vmatpush2.msra.mxu0 0.0
        %1307 = vmatprep.mubr.f32.mxu0 0.0
        %1308 = vmatmul.mubr.f32.gmra.mxu0 %v1196
        %v1309 = vpop.f32.mrf.mxu0
        %v1310 = vadd.f32 %v1194, %v1309
        %v1311 = vpop.f32.mrf.mxu0
        %1312 = vmatprep.mubr.f32.mxu0 0.0
        %1313 = vmatmul.mubr.f32.gmra.mxu0 %v1199
        %v1314 = vpop.f32.mrf.mxu0
        %v1315 = vadd.f32 %v1194, %v1314
        %v1316 = vpop.f32.mrf.mxu0
        %1317 = vmatprep.mubr.f32.mxu0 0.0
        %1318 = vmatmul.mubr.f32.gmra.mxu0 %v1202
        %v1319 = vpop.f32.mrf.mxu0
        %v1320 = vadd.f32 %v1194, %v1319
        %v1321 = vpop.f32.mrf.mxu0
        %1322 = vmatprep.mubr.f32.mxu0 0.0
        %1323 = vmatmul.mubr.f32.gmra.mxu0 %v1205
        %v1324 = vpop.f32.mrf.mxu0
        %v1325 = vadd.f32 %v1194, %v1324
        %v1326 = vpop.f32.mrf.mxu0
        %1327 = vmatprep.mubr.f32.mxu0 0.0
        %1328 = vmatmul.mubr.f32.gmra.mxu0 %v1208
        %v1329 = vpop.f32.mrf.mxu0
        %v1330 = vadd.f32 %v1194, %v1329
        %v1331 = vpop.f32.mrf.mxu0
        %1332 = vmatprep.mubr.f32.mxu0 0.0
        %1333 = vmatmul.mubr.f32.gmra.mxu0 %v1211
        %v1334 = vpop.f32.mrf.mxu0
        %v1335 = vadd.f32 %v1194, %v1334
        %v1336 = vpop.f32.mrf.mxu0
        %1337 = vmatprep.mubr.f32.mxu0 0.0
        %1338 = vmatmul.mubr.f32.gmra.mxu0 %v1214
        %v1339 = vpop.f32.mrf.mxu0
        %v1340 = vadd.f32 %v1194, %v1339
        %v1341 = vpop.f32.mrf.mxu0
        %1342 = vmatprep.mubr.f32.mxu0 0.0
        %1343 = vmatmul.mubr.f32.gmra.mxu0 %v1217
        %v1344 = vpop.f32.mrf.mxu0
        %v1345 = vadd.f32 %v1194, %v1344
        %v1346 = vpop.f32.mrf.mxu0
        %1347 = vmatprep.mubr.f32.mxu0 0.0
        %1348 = vmatmul.mubr.f32.gmra.mxu0 %v1220
        %v1349 = vpop.f32.mrf.mxu0
        %v1350 = vadd.f32 %v1194, %v1349
        %v1351 = vpop.f32.mrf.mxu0
        %1352 = vmatprep.mubr.f32.mxu0 0.0
        %1353 = vmatmul.mubr.f32.gmra.mxu0 %v1223
        %v1354 = vpop.f32.mrf.mxu0
        %v1355 = vadd.f32 %v1194, %v1354
        %v1356 = vpop.f32.mrf.mxu0
        %1357 = vmatprep.mubr.f32.mxu0 0.0
        %1358 = vmatmul.mubr.f32.gmra.mxu0 %v1226
        %v1359 = vpop.f32.mrf.mxu0
        %v1360 = vadd.f32 %v1194, %v1359
        %v1361 = vpop.f32.mrf.mxu0
        %1362 = vmatprep.mubr.f32.mxu0 0.0
        %1363 = vmatmul.mubr.f32.gmra.mxu0 %v1229
        %v1364 = vpop.f32.mrf.mxu0
        %v1365 = vadd.f32 %v1194, %v1364
        %v1366 = vpop.f32.mrf.mxu0
        %1367 = vmatprep.mubr.f32.mxu0 0.0
        %1368 = vmatmul.mubr.f32.gmra.mxu0 %v1232
        %v1369 = vpop.f32.mrf.mxu0
        %v1370 = vadd.f32 %v1194, %v1369
        %v1371 = vpop.f32.mrf.mxu0
        %1372 = vmatprep.mubr.f32.mxu0 0.0
        %1373 = vmatmul.mubr.f32.gmra.mxu0 %v1235
        %v1374 = vpop.f32.mrf.mxu0
        %v1375 = vadd.f32 %v1194, %v1374
        %v1376 = vpop.f32.mrf.mxu0
        %1377 = vmatprep.mubr.f32.mxu0 0.0
        %1378 = vmatmul.mubr.f32.gmra.mxu0 %v1238
        %v1379 = vpop.f32.mrf.mxu0
        %v1380 = vadd.f32 %v1194, %v1379
        %v1381 = vpop.f32.mrf.mxu0
        %1382 = vmatprep.mubr.f32.mxu0 0.0
        %1383 = vmatmul.mubr.f32.gmra.mxu0 %v1241
        %v1384 = vpop.f32.mrf.mxu0
        %v1385 = vadd.f32 %v1194, %v1384
        %v1386 = vpop.f32.mrf.mxu0
        %1387 = vdwg.mxu0
        %v1388 = vtanh.pop %v1310
        %v1389 = vtanh.pop %v1315
        %v1390 = vtanh.pop %v1320
        %v1391 = vtanh.pop %v1325
        %v1392 = vtanh.pop %v1330
        %v1393 = vtanh.pop %v1335
        %v1394 = vtanh.pop %v1340
        %v1395 = vtanh.pop %v1345
        %v1396 = vtanh.pop %v1350
        %v1397 = vtanh.pop %v1355
        %v1398 = vtanh.pop %v1360
        %v1399 = vtanh.pop %v1365
        %v1400 = vtanh.pop %v1370
        %v1401 = vtanh.pop %v1375
        %v1402 = vtanh.pop %v1380
        %v1403 = vtanh.pop %v1385
        %v1404 = vsel %vm485, %v1388, 0.0
        %1405 = vadd.xlane.f32.xlu0 %v1404
        %v1406 = vpop.xlane.xlu0 %1405
        %v1407 = vsel %vm485, %v1389, 0.0
        %1408 = vadd.xlane.f32.xlu0 %v1407
        %v1409 = vpop.xlane.xlu0 %1408
        %v1410 = vsel %vm485, %v1390, 0.0
        %1411 = vadd.xlane.f32.xlu0 %v1410
        %v1412 = vpop.xlane.xlu0 %1411
        %v1413 = vsel %vm485, %v1391, 0.0
        %1414 = vadd.xlane.f32.xlu0 %v1413
        %v1415 = vpop.xlane.xlu0 %1414
        %v1416 = vsel %vm485, %v1392, 0.0
        %1417 = vadd.xlane.f32.xlu0 %v1416
        %v1418 = vpop.xlane.xlu0 %1417
        %v1419 = vsel %vm485, %v1393, 0.0
        %1420 = vadd.xlane.f32.xlu0 %v1419
        %v1421 = vpop.xlane.xlu0 %1420
        %v1422 = vsel %vm485, %v1394, 0.0
        %1423 = vadd.xlane.f32.xlu0 %v1422
        %v1424 = vpop.xlane.xlu0 %1423
        %v1425 = vsel %vm485, %v1395, 0.0
        %1426 = vadd.xlane.f32.xlu0 %v1425
        %v1427 = vpop.xlane.xlu0 %1426
        %v1428 = vsel %vm485, %v1396, 0.0
        %1429 = vadd.xlane.f32.xlu0 %v1428
        %v1430 = vpop.xlane.xlu0 %1429
        %v1431 = vsel %vm485, %v1397, 0.0
        %1432 = vadd.xlane.f32.xlu0 %v1431
        %v1433 = vpop.xlane.xlu0 %1432
        %v1434 = vsel %vm485, %v1398, 0.0
        %1435 = vadd.xlane.f32.xlu0 %v1434
        %v1436 = vpop.xlane.xlu0 %1435
        %v1437 = vsel %vm485, %v1399, 0.0
        %1438 = vadd.xlane.f32.xlu0 %v1437
        %v1439 = vpop.xlane.xlu0 %1438
        %v1440 = vsel %vm485, %v1400, 0.0
        %1441 = vadd.xlane.f32.xlu0 %v1440
        %v1442 = vpop.xlane.xlu0 %1441
        %v1443 = vsel %vm485, %v1401, 0.0
        %1444 = vadd.xlane.f32.xlu0 %v1443
        %v1445 = vpop.xlane.xlu0 %1444
        %v1446 = vsel %vm485, %v1402, 0.0
        %1447 = vadd.xlane.f32.xlu0 %v1446
        %v1448 = vpop.xlane.xlu0 %1447
        %v1449 = vsel %vm485, %v1403, 0.0
        %1450 = vadd.xlane.f32.xlu0 %v1449
        %v1451 = vpop.xlane.xlu0 %1450
        %v1452 = vmul.f32 %v1406, %v534
        %v1453 = vmul.f32 %v1409, %v534
        %v1454 = vmul.f32 %v1412, %v534
        %v1455 = vmul.f32 %v1415, %v534
        %v1456 = vmul.f32 %v1418, %v534
        %v1457 = vmul.f32 %v1421, %v534
        %v1458 = vmul.f32 %v1424, %v534
        %v1459 = vmul.f32 %v1427, %v534
        %v1460 = vmul.f32 %v1430, %v534
        %v1461 = vmul.f32 %v1433, %v534
        %v1462 = vmul.f32 %v1436, %v534
        %v1463 = vmul.f32 %v1439, %v534
        %v1464 = vmul.f32 %v1442, %v534
        %v1465 = vmul.f32 %v1445, %v534
        %v1466 = vmul.f32 %v1448, %v534
        %v1467 = vmul.f32 %v1451, %v534
        %v1468 = vmul.f32 %v1388, %v1388
        %v1469 = vmul.f32 %v1389, %v1389
        %v1470 = vmul.f32 %v1390, %v1390
        %v1471 = vmul.f32 %v1391, %v1391
        %v1472 = vmul.f32 %v1392, %v1392
        %v1473 = vmul.f32 %v1393, %v1393
        %v1474 = vmul.f32 %v1394, %v1394
        %v1475 = vmul.f32 %v1395, %v1395
        %v1476 = vmul.f32 %v1396, %v1396
        %v1477 = vmul.f32 %v1397, %v1397
        %v1478 = vmul.f32 %v1398, %v1398
        %v1479 = vmul.f32 %v1399, %v1399
        %v1480 = vmul.f32 %v1400, %v1400
        %v1481 = vmul.f32 %v1401, %v1401
        %v1482 = vmul.f32 %v1402, %v1402
        %v1483 = vmul.f32 %v1403, %v1403
        %v1484 = vsel %vm485, %v1468, 0.0
        %1485 = vadd.xlane.f32.xlu0 %v1484
        %v1486 = vpop.xlane.xlu0 %1485
        %v1487 = vsel %vm485, %v1469, 0.0
        %1488 = vadd.xlane.f32.xlu0 %v1487
        %v1489 = vpop.xlane.xlu0 %1488
        %v1490 = vsel %vm485, %v1470, 0.0
        %1491 = vadd.xlane.f32.xlu0 %v1490
        %v1492 = vpop.xlane.xlu0 %1491
        %v1493 = vsel %vm485, %v1471, 0.0
        %1494 = vadd.xlane.f32.xlu0 %v1493
        %v1495 = vpop.xlane.xlu0 %1494
        %v1496 = vsel %vm485, %v1472, 0.0
        %1497 = vadd.xlane.f32.xlu0 %v1496
        %v1498 = vpop.xlane.xlu0 %1497
        %v1499 = vsel %vm485, %v1473, 0.0
        %1500 = vadd.xlane.f32.xlu0 %v1499
        %v1501 = vpop.xlane.xlu0 %1500
        %v1502 = vsel %vm485, %v1474, 0.0
        %1503 = vadd.xlane.f32.xlu0 %v1502
        %v1504 = vpop.xlane.xlu0 %1503
        %v1505 = vsel %vm485, %v1475, 0.0
        %1506 = vadd.xlane.f32.xlu0 %v1505
        %v1507 = vpop.xlane.xlu0 %1506
        %v1508 = vsel %vm485, %v1476, 0.0
        %1509 = vadd.xlane.f32.xlu0 %v1508
        %v1510 = vpop.xlane.xlu0 %1509
        %v1511 = vsel %vm485, %v1477, 0.0
        %1512 = vadd.xlane.f32.xlu0 %v1511
        %v1513 = vpop.xlane.xlu0 %1512
        %v1514 = vsel %vm485, %v1478, 0.0
        %1515 = vadd.xlane.f32.xlu0 %v1514
        %v1516 = vpop.xlane.xlu0 %1515
        %v1517 = vsel %vm485, %v1479, 0.0
        %1518 = vadd.xlane.f32.xlu0 %v1517
        %v1519 = vpop.xlane.xlu0 %1518
        %v1520 = vsel %vm485, %v1480, 0.0
        %1521 = vadd.xlane.f32.xlu0 %v1520
        %v1522 = vpop.xlane.xlu0 %1521
        %v1523 = vsel %vm485, %v1481, 0.0
        %1524 = vadd.xlane.f32.xlu0 %v1523
        %v1525 = vpop.xlane.xlu0 %1524
        %v1526 = vsel %vm485, %v1482, 0.0
        %1527 = vadd.xlane.f32.xlu0 %v1526
        %v1528 = vpop.xlane.xlu0 %1527
        %v1529 = vsel %vm485, %v1483, 0.0
        %1530 = vadd.xlane.f32.xlu0 %v1529
        %v1531 = vpop.xlane.xlu0 %1530
        %v1532 = vmul.f32 %v1486, %v534
        %v1533 = vmul.f32 %v1489, %v534
        %v1534 = vmul.f32 %v1492, %v534
        %v1535 = vmul.f32 %v1495, %v534
        %v1536 = vmul.f32 %v1498, %v534
        %v1537 = vmul.f32 %v1501, %v534
        %v1538 = vmul.f32 %v1504, %v534
        %v1539 = vmul.f32 %v1507, %v534
        %v1540 = vmul.f32 %v1510, %v534
        %v1541 = vmul.f32 %v1513, %v534
        %v1542 = vmul.f32 %v1516, %v534
        %v1543 = vmul.f32 %v1519, %v534
        %v1544 = vmul.f32 %v1522, %v534
        %v1545 = vmul.f32 %v1525, %v534
        %v1546 = vmul.f32 %v1528, %v534
        %v1547 = vmul.f32 %v1531, %v534
        %v1548 = vmul.f32 %v1452, %v1452
        %v1549 = vmul.f32 %v1453, %v1453
        %v1550 = vmul.f32 %v1454, %v1454
        %v1551 = vmul.f32 %v1455, %v1455
        %v1552 = vmul.f32 %v1456, %v1456
        %v1553 = vmul.f32 %v1457, %v1457
        %v1554 = vmul.f32 %v1458, %v1458
        %v1555 = vmul.f32 %v1459, %v1459
        %v1556 = vmul.f32 %v1460, %v1460
        %v1557 = vmul.f32 %v1461, %v1461
        %v1558 = vmul.f32 %v1462, %v1462
        %v1559 = vmul.f32 %v1463, %v1463
        %v1560 = vmul.f32 %v1464, %v1464
        %v1561 = vmul.f32 %v1465, %v1465
        %v1562 = vmul.f32 %v1466, %v1466
        %v1563 = vmul.f32 %v1467, %v1467
        %v1564 = vsub.f32 %v1532, %v1548
        %v1565 = vsub.f32 %v1533, %v1549
        %v1566 = vsub.f32 %v1534, %v1550
        %v1567 = vsub.f32 %v1535, %v1551
        %v1568 = vsub.f32 %v1536, %v1552
        %v1569 = vsub.f32 %v1537, %v1553
        %v1570 = vsub.f32 %v1538, %v1554
        %v1571 = vsub.f32 %v1539, %v1555
        %v1572 = vsub.f32 %v1540, %v1556
        %v1573 = vsub.f32 %v1541, %v1557
        %v1574 = vsub.f32 %v1542, %v1558
        %v1575 = vsub.f32 %v1543, %v1559
        %v1576 = vsub.f32 %v1544, %v1560
        %v1577 = vsub.f32 %v1545, %v1561
        %v1578 = vsub.f32 %v1546, %v1562
        %v1579 = vsub.f32 %v1547, %v1563
        %v1580 = vsub.f32 %v1388, %v1452
        %v1581 = vsub.f32 %v1389, %v1453
        %v1582 = vsub.f32 %v1390, %v1454
        %v1583 = vsub.f32 %v1391, %v1455
        %v1584 = vsub.f32 %v1392, %v1456
        %v1585 = vsub.f32 %v1393, %v1457
        %v1586 = vsub.f32 %v1394, %v1458
        %v1587 = vsub.f32 %v1395, %v1459
        %v1588 = vsub.f32 %v1396, %v1460
        %v1589 = vsub.f32 %v1397, %v1461
        %v1590 = vsub.f32 %v1398, %v1462
        %v1591 = vsub.f32 %v1399, %v1463
        %v1592 = vsub.f32 %v1400, %v1464
        %v1593 = vsub.f32 %v1401, %v1465
        %v1594 = vsub.f32 %v1402, %v1466
        %v1595 = vsub.f32 %v1403, %v1467
        %v1596 = vadd.f32 %v1564, 1e-05
        %v1597 = vadd.f32 %v1565, 1e-05
        %v1598 = vadd.f32 %v1566, 1e-05
        %v1599 = vadd.f32 %v1567, 1e-05
        %v1600 = vadd.f32 %v1568, 1e-05
        %v1601 = vadd.f32 %v1569, 1e-05
        %v1602 = vadd.f32 %v1570, 1e-05
        %v1603 = vadd.f32 %v1571, 1e-05
        %v1604 = vadd.f32 %v1572, 1e-05
        %v1605 = vadd.f32 %v1573, 1e-05
        %v1606 = vadd.f32 %v1574, 1e-05
        %v1607 = vadd.f32 %v1575, 1e-05
        %v1608 = vadd.f32 %v1576, 1e-05
        %v1609 = vadd.f32 %v1577, 1e-05
        %v1610 = vadd.f32 %v1578, 1e-05
        %v1611 = vadd.f32 %v1579, 1e-05
        %v1612 = vrsqrt.pop %v1596
        %v1613 = vrsqrt.pop %v1597
        %v1614 = vrsqrt.pop %v1598
        %v1615 = vrsqrt.pop %v1599
        %v1616 = vrsqrt.pop %v1600
        %v1617 = vrsqrt.pop %v1601
        %v1618 = vrsqrt.pop %v1602
        %v1619 = vrsqrt.pop %v1603
        %v1620 = vrsqrt.pop %v1604
        %v1621 = vrsqrt.pop %v1605
        %v1622 = vrsqrt.pop %v1606
        %v1623 = vrsqrt.pop %v1607
        %v1624 = vrsqrt.pop %v1608
        %v1625 = vrsqrt.pop %v1609
        %v1626 = vrsqrt.pop %v1610
        %v1627 = vrsqrt.pop %v1611
        %v1628 = vmul.f32 %v1580, %v1612
        %v1629 = vmul.f32 %v1581, %v1613
        %v1630 = vmul.f32 %v1582, %v1614
        %v1631 = vmul.f32 %v1583, %v1615
        %v1632 = vmul.f32 %v1584, %v1616
        %v1633 = vmul.f32 %v1585, %v1617
        %v1634 = vmul.f32 %v1586, %v1618
        %v1635 = vmul.f32 %v1587, %v1619
        %v1636 = vmul.f32 %v1588, %v1620
        %v1637 = vmul.f32 %v1589, %v1621
        %v1638 = vmul.f32 %v1590, %v1622
        %v1639 = vmul.f32 %v1591, %v1623
        %v1640 = vmul.f32 %v1592, %v1624
        %v1641 = vmul.f32 %v1593, %v1625
        %v1642 = vmul.f32 %v1594, %v1626
        %v1643 = vmul.f32 %v1595, %v1627
        %v1644 = vld [vmem:[%s4] sm:$0xff]
        %v1645 = vld [vmem:[%s5] sm:$0xff]
        %1647 = vset.pattern.permute.xlu0 0
        %1648 = vperm.xlu0 %1647, %v1645
        %v1649 = vpop.permute.xlu0 %1648
        %v1652 = vsel %vm485, %v1644, 0
        %v1655 = vsel %vm485, %v1628, 0
        %v1658 = vsel %vm485, %v1629, 0
        %v1661 = vsel %vm485, %v1630, 0
        %v1664 = vsel %vm485, %v1631, 0
        %v1667 = vsel %vm485, %v1632, 0
        %v1670 = vsel %vm485, %v1633, 0
        %v1673 = vsel %vm485, %v1634, 0
        %v1676 = vsel %vm485, %v1635, 0
        %v1679 = vsel %vm485, %v1636, 0
        %v1682 = vsel %vm485, %v1637, 0
        %v1685 = vsel %vm485, %v1638, 0
        %v1688 = vsel %vm485, %v1639, 0
        %v1691 = vsel %vm485, %v1640, 0
        %v1694 = vsel %vm485, %v1641, 0
        %v1697 = vsel %vm485, %v1642, 0
        %v1700 = vsel %vm485, %v1643, 0
        %1702 = vmatprep.subr.mxu0 0.0
        %1703 = vmatpush1.xpose.msra.mxu0 %v1700
        %1704 = vmatprep.subr.mxu0 0.0
        %1705 = vmatpush1.xpose.msra.mxu0 %v1697
        %1706 = vmatprep.subr.mxu0 0.0
        %1707 = vmatpush1.xpose.msra.mxu0 %v1694
        %1708 = vmatprep.subr.mxu0 0.0
        %1709 = vmatpush1.xpose.msra.mxu0 %v1691
        %1710 = vmatprep.subr.mxu0 0.0
        %1711 = vmatpush1.xpose.msra.mxu0 %v1688
        %1712 = vmatprep.subr.mxu0 0.0
        %1713 = vmatpush1.xpose.msra.mxu0 %v1685
        %1714 = vmatprep.subr.mxu0 0.0
        %1715 = vmatpush1.xpose.msra.mxu0 %v1682
        %1716 = vmatprep.subr.mxu0 0.0
        %1717 = vmatpush1.xpose.msra.mxu0 %v1679
        %1718 = vmatprep.subr.mxu0 0.0
        %1719 = vmatpush1.xpose.msra.mxu0 %v1676
        %1720 = vmatprep.subr.mxu0 0.0
        %1721 = vmatpush1.xpose.msra.mxu0 %v1673
        %1722 = vmatprep.subr.mxu0 0.0
        %1723 = vmatpush1.xpose.msra.mxu0 %v1670
        %1724 = vmatprep.subr.mxu0 0.0
        %1725 = vmatpush1.xpose.msra.mxu0 %v1667
        %1726 = vmatprep.subr.mxu0 0.0
        %1727 = vmatpush1.xpose.msra.mxu0 %v1664
        %1728 = vmatprep.subr.mxu0 0.0
        %1729 = vmatpush1.xpose.msra.mxu0 %v1661
        %1730 = vmatprep.subr.mxu0 0.0
        %1731 = vmatpush1.xpose.msra.mxu0 %v1658
        %1732 = vmatprep.subr.mxu0 0.0
        %1733 = vmatpush1.xpose.msra.mxu0 %v1655
        %1734 = vmatprep.subr.mxu0 0.0
        %1735 = vmatpush2.xpose.msra.mxu0 0.0
        %1736 = vmatprep.subr.mxu0 0.0
        %1737 = vmatpush2.xpose.msra.mxu0 0.0
        %1738 = vmatprep.subr.mxu0 0.0
        %1739 = vmatpush2.xpose.msra.mxu0 0.0
        %1740 = vmatprep.subr.mxu0 0.0
        %1741 = vmatpush2.xpose.msra.mxu0 0.0
        %1742 = vmatprep.subr.mxu0 0.0
        %1743 = vmatpush2.xpose.msra.mxu0 0.0
        %1744 = vmatprep.subr.mxu0 0.0
        %1745 = vmatpush2.xpose.msra.mxu0 0.0
        %1746 = vmatprep.subr.mxu0 0.0
        %1747 = vmatpush2.xpose.msra.mxu0 0.0
        %1748 = vmatprep.subr.mxu0 0.0
        %1749 = vmatpush2.xpose.msra.mxu0 0.0
        %1750 = vmatprep.subr.mxu0 0.0
        %1751 = vmatpush2.xpose.msra.mxu0 0.0
        %1752 = vmatprep.subr.mxu0 0.0
        %1753 = vmatpush2.xpose.msra.mxu0 0.0
        %1754 = vmatprep.subr.mxu0 0.0
        %1755 = vmatpush2.xpose.msra.mxu0 0.0
        %1756 = vmatprep.subr.mxu0 0.0
        %1757 = vmatpush2.xpose.msra.mxu0 0.0
        %1758 = vmatprep.subr.mxu0 0.0
        %1759 = vmatpush2.xpose.msra.mxu0 0.0
        %1760 = vmatprep.subr.mxu0 0.0
        %1761 = vmatpush2.xpose.msra.mxu0 0.0
        %1762 = vmatprep.subr.mxu0 0.0
        %1763 = vmatpush2.xpose.msra.mxu0 0.0
        %1764 = vmatprep.subr.mxu0 0.0
        %1765 = vmatpush2.xpose.msra.mxu0 0.0
        %1766 = vmatprep.mubr.f32.mxu0 0.0
        %1767 = vmatmul.mubr.f32.gmra.mxu0 %v1652
        %v1768 = vpop.f32.mrf.mxu0
        %v1769 = vadd.f32 %v1649, %v1768
        %v1770 = vpop.f32.mrf.mxu0
        %1771 = vdwg.mxu0
        %1772 = vst [vmem:[%s245] sm:$0xff] %v1769
        %s1773 = sand.u32 %s159, 1
        %s1774 = scalar_lea.sflag [#allocation3], %s1773
        %s1775 = sand.u32 %s159, 1
        %s1776 = smul.addr %s1775, 8
        %s1777 = scalar_lea.vmem [#allocation2], %s1776
        // Predicated region
        $region45: #{tpu_custom_call.1} parent=43 // pred_check
          %p1778 = pneg %p169
        $region46: #{tpu_custom_call.1} parent=43 // pred_check_branch
          %1780 = sbr.rel (%p1778) target = $region48
        $region47: #{tpu_custom_call.1} parent=43 // pred_region
          %s1782 = ssub.s32 128, 128
          %1783 = vsyncadd %s1774, %s1782
          %s1784 = smul.addr %s20, 128
          %s1785 = scalar_lea.hbm %s6, %s1784
          %s1787 = sshll.u32 %s1777, 4
          %s1788 = int_to_ptr.vmem [resolvable:$true] %s1787
          %1790 = dma.vmem_to_hbm [thread:$0]  %s1788, 128, %s1785, %s1774
        $region48: #{tpu_custom_call.1} parent=43 // pred_fallthru
          _
      $region44: #{tpu_custom_call.1} parent=5 // pred_fallthru
        _
      %p1791 = scmp.le.s32.totalorder 2, %s15
      // Predicated region
      $region49: #{tpu_custom_call.1} parent=5 // pred_check
        %p1792 = pneg %p1791
      $region50: #{tpu_custom_call.1} parent=5 // pred_check_branch
        %1794 = sbr.rel (%p1792) target = $region52
      $region51: #{tpu_custom_call.1} parent=5 // pred_region
        %s1795 = ssub.s32 %s15, 2
        // Predicated region
        $region53: #{tpu_custom_call.1} parent=51 // pred_check
          %p1796 = pneg %p175
        $region54: #{tpu_custom_call.1} parent=51 // pred_check_branch
          %1798 = sbr.rel (%p1796) target = $region56
        $region55: #{tpu_custom_call.1} parent=51 // pred_region
          %s1799 = sand.u32 %s160, 1
          %s1800 = scalar_lea.sflag [#allocation3], %s1799
          %s1801 = sand.u32 %s160, 1
          %s1802 = smul.addr %s1801, 8
          %s1803 = scalar_lea.vmem [#allocation2], %s1802
          %1804 = dma.done %s1800, 128
        $region56: #{tpu_custom_call.1} parent=51 // pred_fallthru
          _
      $region52: #{tpu_custom_call.1} parent=5 // pred_fallthru
        _
    $region6: #{tpu_custom_call.1} parent=1 // loop_footer
      %s19 = sadd.s32 1, %s15
    $region7: #{tpu_custom_call.1} parent=1 // loop_footer_branch
      %14 = sbr.rel target = $region3
    $region8: #{tpu_custom_call.1} parent=1 // loop_exit
      _
    %1805 = vsyncpa [#allocation3], 1
    %s1806 = scalar_lea.sflag [#allocation3], 1
    %1807 = vsyncpa %s1806, 1

</llo_original>
